<compile_context>
chip_gen: v5e
topology: v5e:2x2
jax: 0.10.0
libtpu: 0.0.40
codegen_flags: <defaults>
</compile_context>

<pallas_src>
import math
import functools

import jax
import jax.numpy as jnp
from jax.experimental import pallas as pl
from jax.experimental.pallas import tpu as pltpu


# ----------------------------------------------------------------------------
# One dense masked TransformerConv (heads, concat) + root skip + fused ReLU.
# x_bf16 : [N, D] bf16 (cast once by the caller)
# nmask  : [N, N] f32 additive mask (0 where edge, -1e30 otherwise), shared.
# ----------------------------------------------------------------------------
def _gnn_layer(x_bf16, nmask, w_fused, b_fused, *, heads):
    n, d = x_bf16.shape
    c = d // heads
    scale = 1.0 / math.sqrt(c)

    # Fused (query | key | value | skip) projection: one wide bf16 MXU matmul.
    proj = jnp.dot(x_bf16, w_fused, preferred_element_type=jnp.float32) + b_fused  # [N, 4D] f32
    q, k, v = proj[:, 0 * d:1 * d], proj[:, 1 * d:2 * d], proj[:, 2 * d:3 * d]
    skip = proj[:, 3 * d:4 * d]

    def to_heads(t):                 # bf16 cast BEFORE relayout; [N, D] -> [H, N, c]
        return t.astype(jnp.bfloat16).reshape(n, heads, c).transpose(1, 0, 2)

    qh, kh, vh = to_heads(q), to_heads(k), to_heads(v)

    # Scores for all heads in one batched contraction (f32 accumulate / softmax).
    s = jnp.einsum('hqc,hkc->hqk', qh, kh,
                   preferred_element_type=jnp.float32) * scale              # [H, N, N]
    s = s + nmask                    # single additive mask (implicit broadcast over H)
    m = jnp.max(s, axis=-1, keepdims=True)                                  # [H, N, 1]
    e = jnp.exp(s - m)               # masked entries underflow to exactly 0.0
    denom = jnp.sum(e, axis=-1, keepdims=True)                              # [H, N, 1] >= 1

    # Aggregate first, normalize after (EUP reciprocal, not an [N, N] divide).
    agg = jnp.einsum('hqk,hkc->hqc', e.astype(jnp.bfloat16), vh,
                     preferred_element_type=jnp.float32)                    # [H, N, c]
    # Zero in-degree rows: row max stays ~-1e30 -> output = skip only.
    inv = jnp.where(m > -1e29, pl.reciprocal(denom, approx=True), 0.0)
    agg = agg * inv

    out = agg.transpose(1, 0, 2).reshape(n, d) + skip                       # [N, D]
    return jnp.maximum(out, 0.0)                                            # fused ReLU


# ----------------------------------------------------------------------------
# Whole CDGTN eval forward in a single kernel.
# ----------------------------------------------------------------------------
def _cdgtn_kernel(x_ref, adj_ref, idx_ref, mask_ref,
                  wg1_ref, bg1_ref, wg2_ref, bg2_ref,
                  wikq_ref, bi_ref, ws_ref, bs_ref,
                  w1_ref, b1_ref, w2_ref, b2_ref,
                  out_ref, h_scratch, xp_scratch, *, heads):
    # adj[i, j] = 1 iff edge j -> i (stored int8); compare in f32 (v5e-safe).
    # Additive mask is built ONCE and shared by both GNN layers.
    nmask = jnp.where(adj_ref[...].astype(jnp.float32) > 0.0,
                      0.0, jnp.float32(-1e30))                              # [N, N] f32

    # --- two TransformerConv + ReLU layers (adjacency resident across both) --
    h = _gnn_layer(x_ref[...].astype(jnp.bfloat16), nmask,
                   wg1_ref[...], bg1_ref[...], heads=heads)
    h = _gnn_layer(h.astype(jnp.bfloat16), nmask,
                   wg2_ref[...], bg2_ref[...], heads=heads)                 # [N, D] f32

    # --- pad(tensor, batch_index) as an SMEM-indexed row gather (exact f32) --
    b, l = mask_ref.shape
    n, d = h.shape
    h_scratch[...] = h
    for i in range(b * l):                                  # B*L small, static unroll
        xp_scratch[pl.ds(i, 1), :] = h_scratch[pl.ds(idx_ref[i], 1), :]
    xp2 = xp_scratch[...]                                                   # [B*L, D] f32
    xp = xp2.reshape(b, l, d)

    # --- attention pooling (eval branch) -------------------------------------
    # att_i(cat([x_q, x_k])) == x_q @ Wq + x_k @ Wk + b; both projections fused
    # into one [B*L, D] @ [D, 2D] matmul (k_part = lanes :D, q_part = root rows,
    # lanes D:).
    projp = jnp.dot(xp2.astype(jnp.bfloat16), wikq_ref[...],
                    preferred_element_type=jnp.float32).reshape(b, l, 2 * d)
    k_part = projp[..., :d]                                                 # [B, L, D]
    q_part = projp[:, 0, d:]             # root query: slot 0 of each padded graph
    xc = jnp.maximum(q_part[:, None, :] + k_part + bi_ref[...], 0.0)        # [B, L, D]

    # att_s ([D,1] linear) as a VPU multiply + lane reduction.
    score = jnp.sum(xc * ws_ref[...], axis=-1, keepdims=True) + bs_ref[...]  # [B, L, 1]

    pad = mask_ref[...][..., None] > 0.0                                    # 1.0 == padding
    xv = jnp.where(pad, 0.0, xp)
    score = jnp.where(pad, jnp.float32(-1e30), score)

    sm = jnp.max(score, axis=1, keepdims=True)
    se = jnp.exp(score - sm)
    alpha = se * pl.reciprocal(jnp.sum(se, axis=1, keepdims=True), approx=True)
    pooled = jnp.sum(xv * alpha, axis=1)                                    # [B, D]

    # --- fc1 / tanh + fc2 + log_softmax --------------------------------------
    h1 = jnp.tanh(jnp.dot(pooled.astype(jnp.bfloat16), w1_ref[...],
                          preferred_element_type=jnp.float32) + b1_ref[...])
    logits = jnp.dot(h1.astype(jnp.bfloat16), w2_ref[...],
                     preferred_element_type=jnp.float32) + b2_ref[...]      # [B, label]
    lmax = jnp.max(logits, axis=-1, keepdims=True)
    lse = jnp.log(jnp.sum(jnp.exp(logits - lmax), axis=-1, keepdims=True)) + lmax
    out_ref[...] = logits - lse                                             # log_softmax


def cdgtn_forward(x, adj, idx, mask, params, *, heads, label_dim):
    n, d = x.shape
    b, l = mask.shape
    kernel = functools.partial(_cdgtn_kernel, heads=heads)
    vmem = pl.BlockSpec(memory_space=pltpu.MemorySpace.VMEM)
    smem = pl.BlockSpec(memory_space=pltpu.MemorySpace.SMEM)
    in_specs = [vmem, vmem, smem, vmem] + [vmem] * len(params)
    return pl.pallas_call(
        kernel,
        out_shape=jax.ShapeDtypeStruct((b, label_dim), jnp.float32),
        in_specs=in_specs,
        out_specs=vmem,
        scratch_shapes=[pltpu.VMEM((n, d), jnp.float32),        # GNN output (gather src)
                        pltpu.VMEM((b * l, d), jnp.float32)],   # padded tensor
        compiler_params=pltpu.CompilerParams(
            vmem_limit_bytes=48 * 1024 * 1024),   # explicit; < v7x's 64 MiB physical
    )(x, adj, idx, mask, *params)


# ----------------------------------------------------------------------------
if __name__ == "__main__":
    hidden_dim, mh_size, label_dim = 32, 2, 3
    lens = [5, 3]                     # nodes per graph (node 0 of each graph = root)
    N, B, L = sum(lens), len(lens), max(lens)
    D = hidden_dim

    key = jax.random.PRNGKey(0)
    ks = jax.random.split(key, 8)

    x = jax.random.normal(ks[0], (N, D), jnp.float32)

    # deterministic bidirectional propagation trees (graph 0: nodes 0..4, graph 1: 5..7)
    edges = [(0, 1), (1, 0), (0, 2), (2, 0), (1, 3), (3, 1), (2, 4), (4, 2),
             (5, 6), (6, 5), (5, 7), (7, 5)]
    edge_index = jnp.array(edges, jnp.int32).T                               # [2, E]
    # adj[i, j] = 1 iff edge j -> i (== SparseTensor(row=e0, col=e1).t()), int8 mask
    adj = (jnp.zeros((N, N), jnp.float32)
           .at[edge_index[1], edge_index[0]].set(1.0)).astype(jnp.int8)

    # pad(tensor, batch_index): SMEM row-index table [B*L] + padding mask [B, L]
    # (contract: the first node of each contiguous batch group is that graph's root;
    #  padded slots point at row 0 and are masked out downstream)
    idx = jnp.zeros((B * L,), jnp.int32)
    mask = jnp.ones((B, L), jnp.float32)        # 1.0 == padding position
    off = 0
    for b_idx, ln in enumerate(lens):
        for l_idx in range(ln):
            idx = idx.at[b_idx * L + l_idx].set(off + l_idx)
        mask = mask.at[b_idx, :ln].set(0.0)
        off += ln

    def lin(k, fan_in, fan_out, scale=0.1):
        kw, kb = jax.random.split(k)
        return (jax.random.normal(kw, (fan_in, fan_out), jnp.float32) * scale,
                jax.random.normal(kb, (1, fan_out), jnp.float32) * scale)

    def gnn_fused_params(k):
        k1, k2, k3, k4 = jax.random.split(k, 4)
        wq, bq = lin(k1, D, D)
        wk, bk = lin(k2, D, D)
        wv, bv = lin(k3, D, D)
        ws, bs = lin(k4, D, D)                   # lin_skip (root_weight=True)
        w = jnp.concatenate([wq, wk, wv, ws], axis=1).astype(jnp.bfloat16)  # [D, 4D] bf16
        b = jnp.concatenate([bq, bk, bv, bs], axis=1)                       # [1, 4D] f32
        return w, b

    wg1, bg1 = gnn_fused_params(ks[1])
    wg2, bg2 = gnn_fused_params(ks[2])
    w_att_i, b_att_i = lin(ks[3], 2 * D, D)
    w_att_s, b_att_s = lin(ks[4], D, 1)
    w_fc1, b_fc1 = lin(ks[5], D, D)
    w_fc2, b_fc2 = lin(ks[6], D, label_dim)

    # att_i split into (Wq | Wk) and re-fused as [D, 2D]: lanes :D -> key path,
    # lanes D: -> query path (applied to root rows only inside the kernel).
    w_att_ikq = jnp.concatenate([w_att_i[D:], w_att_i[:D]], axis=1).astype(jnp.bfloat16)

    params = (
        wg1, bg1, wg2, bg2,
        w_att_ikq,                               # [D, 2D] bf16 fused (k | q) projection
        b_att_i,                                 # [1, D] f32
        w_att_s.T,                               # [1, D] f32 row for the VPU reduce
        b_att_s,                                 # [1, 1] f32
        w_fc1.astype(jnp.bfloat16), b_fc1,
        w_fc2.astype(jnp.bfloat16), b_fc2,
    )

    out = cdgtn_forward(x, adj, idx, mask, params,
                        heads=mh_size, label_dim=label_dim)
    out = jax.block_until_ready(out)

    assert out.shape == (B, label_dim)
    assert bool(jnp.all(jnp.isfinite(out)))
    # each row of the log_softmax output should exp-sum to 1
    assert bool(jnp.allclose(jnp.sum(jnp.exp(out), axis=-1), 1.0, atol=1e-4))
    print("KERNEL_OK")
</pallas_src>

<mosaic_0001>
module attributes {stable_mosaic.version = 11 : i64} {
  func.func @_cdgtn_kernel(%arg0: memref<8x32xf32, #tpu.memory_space<vmem>>, %arg1: memref<8x8xi8, #tpu.memory_space<vmem>>, %arg2: memref<10xi32, #tpu.memory_space<smem>>, %arg3: memref<2x5xf32, #tpu.memory_space<vmem>>, %arg4: memref<32x128xbf16, #tpu.memory_space<vmem>>, %arg5: memref<1x128xf32, #tpu.memory_space<vmem>>, %arg6: memref<32x128xbf16, #tpu.memory_space<vmem>>, %arg7: memref<1x128xf32, #tpu.memory_space<vmem>>, %arg8: memref<32x64xbf16, #tpu.memory_space<vmem>>, %arg9: memref<1x32xf32, #tpu.memory_space<vmem>>, %arg10: memref<1x32xf32, #tpu.memory_space<vmem>>, %arg11: memref<1x1xf32, #tpu.memory_space<vmem>>, %arg12: memref<32x32xbf16, #tpu.memory_space<vmem>>, %arg13: memref<1x32xf32, #tpu.memory_space<vmem>>, %arg14: memref<32x3xbf16, #tpu.memory_space<vmem>>, %arg15: memref<1x3xf32, #tpu.memory_space<vmem>>, %arg16: memref<2x3xf32, #tpu.memory_space<vmem>>, %arg17: memref<8x32xf32, #tpu.memory_space<vmem>>, %arg18: memref<10x32xf32, #tpu.memory_space<vmem>>) attributes {dimension_semantics = [], scalar_prefetch = 0 : i64, scratch_operands = 2 : i64, tpu.core_type = #tpu.core_type<tc>} {
    %c0 = arith.constant 0 : index
    %c0_0 = arith.constant 0 : index
    %0 = vector.load %arg1[%c0, %c0_0] : memref<8x8xi8, #tpu.memory_space<vmem>>, vector<8x8xi8>
    %1 = arith.sitofp %0 : vector<8x8xi8> to vector<8x8xf32>
    %cst = arith.constant 0.000000e+00 : f32
    %2 = vector.broadcast %cst : f32 to vector<8x8xf32>
    %3 = arith.cmpf ogt, %1, %2 : vector<8x8xf32>
    %cst_1 = arith.constant 0.000000e+00 : f32
    %cst_2 = arith.constant -1.000000e+30 : f32
    %4 = vector.broadcast %cst_1 : f32 to vector<8x8xf32>
    %5 = vector.broadcast %cst_2 : f32 to vector<8x8xf32>
    %6 = arith.select %3, %4, %5 : vector<8x8xi1>, vector<8x8xf32>
    %c0_3 = arith.constant 0 : index
    %c0_4 = arith.constant 0 : index
    %7 = vector.load %arg0[%c0_3, %c0_4] : memref<8x32xf32, #tpu.memory_space<vmem>>, vector<8x32xf32>
    %8 = arith.truncf %7 : vector<8x32xf32> to vector<8x32xbf16>
    %c0_5 = arith.constant 0 : index
    %c0_6 = arith.constant 0 : index
    %9 = vector.load %arg4[%c0_5, %c0_6] : memref<32x128xbf16, #tpu.memory_space<vmem>>, vector<32x128xbf16>
    %c0_7 = arith.constant 0 : index
    %c0_8 = arith.constant 0 : index
    %10 = vector.load %arg5[%c0_7, %c0_8] : memref<1x128xf32, #tpu.memory_space<vmem>>, vector<1x128xf32>
    %cst_9 = arith.constant dense<0.000000e+00> : vector<8x128xf32>
    %11 = tpu.matmul %8, %9, %cst_9 {dimension_numbers = #tpu.dot_dimension_numbers<[1], [0], [0], [1], [0, 0, 1, 1], [], []>} : vector<8x32xbf16>, vector<32x128xbf16>, vector<8x128xf32> -> vector<8x128xf32>
    %12 = vector.broadcast %10 : vector<1x128xf32> to vector<8x128xf32>
    %13 = arith.addf %11, %12 : vector<8x128xf32>
    %14 = vector.extract_strided_slice %13 {offsets = [0, 0], sizes = [8, 32], strides = [1, 1]} : vector<8x128xf32> to vector<8x32xf32>
    %15 = vector.extract_strided_slice %13 {offsets = [0, 32], sizes = [8, 32], strides = [1, 1]} : vector<8x128xf32> to vector<8x32xf32>
    %16 = vector.extract_strided_slice %13 {offsets = [0, 64], sizes = [8, 32], strides = [1, 1]} : vector<8x128xf32> to vector<8x32xf32>
    %17 = vector.extract_strided_slice %13 {offsets = [0, 96], sizes = [8, 32], strides = [1, 1]} : vector<8x128xf32> to vector<8x32xf32>
    %18 = arith.truncf %14 : vector<8x32xf32> to vector<8x32xbf16>
    %19 = vector.shape_cast %18 : vector<8x32xbf16> to vector<8x2x16xbf16>
    %20 = tpu.transpose %19, [1, 0, 2] : vector<8x2x16xbf16> -> vector<2x8x16xbf16>
    %21 = arith.truncf %15 : vector<8x32xf32> to vector<8x32xbf16>
    %22 = vector.shape_cast %21 : vector<8x32xbf16> to vector<8x2x16xbf16>
    %23 = tpu.transpose %22, [1, 0, 2] : vector<8x2x16xbf16> -> vector<2x8x16xbf16>
    %24 = arith.truncf %16 : vector<8x32xf32> to vector<8x32xbf16>
    %25 = vector.shape_cast %24 : vector<8x32xbf16> to vector<8x2x16xbf16>
    %26 = tpu.transpose %25, [1, 0, 2] : vector<8x2x16xbf16> -> vector<2x8x16xbf16>
    "tpu.trace_start"() <{level = 10 : i32, message = "hqc,hkc->hqk"}> : () -> ()
    %cst_10 = arith.constant dense<0.000000e+00> : vector<2x8x8xf32>
    %27 = tpu.matmul %20, %23, %cst_10 {dimension_numbers = #tpu.dot_dimension_numbers<[2], [2], [1], [1], [0, 0, 0, 1, 1, 1], [0], [0]>} : vector<2x8x16xbf16>, vector<2x8x16xbf16>, vector<2x8x8xf32> -> vector<2x8x8xf32>
    "tpu.trace_stop"() : () -> ()
    %cst_11 = arith.constant 2.500000e-01 : f32
    %28 = vector.broadcast %cst_11 : f32 to vector<2x8x8xf32>
    %29 = arith.mulf %27, %28 : vector<2x8x8xf32>
    %30 = vector.shape_cast %6 : vector<8x8xf32> to vector<1x8x8xf32>
    %31 = vector.broadcast %30 : vector<1x8x8xf32> to vector<2x8x8xf32>
    %32 = arith.addf %29, %31 : vector<2x8x8xf32>
    %cst_12 = arith.constant dense<0xFF800000> : vector<2x8xf32>
    %33 = vector.multi_reduction <maximumf>, %32, %cst_12 [2] : vector<2x8x8xf32> to vector<2x8xf32>
    %34 = vector.shape_cast %33 : vector<2x8xf32> to vector<2x8x1xf32>
    %35 = vector.broadcast %34 : vector<2x8x1xf32> to vector<2x8x8xf32>
    %36 = arith.subf %32, %35 : vector<2x8x8xf32>
    %37 = math.exp %36 : vector<2x8x8xf32>
    %cst_13 = arith.constant dense<0.000000e+00> : vector<2x8xf32>
    %38 = vector.multi_reduction <add>, %37, %cst_13 [2] : vector<2x8x8xf32> to vector<2x8xf32>
    %39 = vector.shape_cast %38 : vector<2x8xf32> to vector<2x8x1xf32>
    %40 = arith.truncf %37 : vector<2x8x8xf32> to vector<2x8x8xbf16>
    "tpu.trace_start"() <{level = 10 : i32, message = "hqk,hkc->hqc"}> : () -> ()
    %cst_14 = arith.constant dense<0.000000e+00> : vector<2x8x16xf32>
    %41 = tpu.matmul %40, %26, %cst_14 {dimension_numbers = #tpu.dot_dimension_numbers<[2], [1], [1], [2], [0, 0, 0, 1, 1, 2], [0], [0]>} : vector<2x8x8xbf16>, vector<2x8x16xbf16>, vector<2x8x16xf32> -> vector<2x8x16xf32>
    %cst_15 = arith.constant -1.000000e+29 : f32
    "tpu.trace_stop"() : () -> ()
    %42 = vector.broadcast %cst_15 : f32 to vector<2x8x1xf32>
    %43 = arith.cmpf ogt, %34, %42 : vector<2x8x1xf32>
    %44 = tpu.reciprocal %39 {approx = true} : vector<2x8x1xf32> -> vector<2x8x1xf32>
    %cst_16 = arith.constant 0.000000e+00 : f32
    %45 = vector.broadcast %cst_16 : f32 to vector<2x8x1xf32>
    %46 = arith.select %43, %44, %45 : vector<2x8x1xi1>, vector<2x8x1xf32>
    %47 = vector.broadcast %46 : vector<2x8x1xf32> to vector<2x8x16xf32>
    %48 = arith.mulf %41, %47 : vector<2x8x16xf32>
    %49 = tpu.transpose %48, [1, 0, 2] : vector<2x8x16xf32> -> vector<8x2x16xf32>
    %50 = vector.shape_cast %49 : vector<8x2x16xf32> to vector<8x32xf32>
    %51 = arith.addf %50, %17 : vector<8x32xf32>
    %cst_17 = arith.constant 0.000000e+00 : f32
    %52 = vector.broadcast %cst_17 : f32 to vector<8x32xf32>
    %53 = arith.maximumf %51, %52 : vector<8x32xf32>
    %54 = arith.truncf %53 : vector<8x32xf32> to vector<8x32xbf16>
    %c0_18 = arith.constant 0 : index
    %c0_19 = arith.constant 0 : index
    %55 = vector.load %arg6[%c0_18, %c0_19] : memref<32x128xbf16, #tpu.memory_space<vmem>>, vector<32x128xbf16>
    %c0_20 = arith.constant 0 : index
    %c0_21 = arith.constant 0 : index
    %56 = vector.load %arg7[%c0_20, %c0_21] : memref<1x128xf32, #tpu.memory_space<vmem>>, vector<1x128xf32>
    %cst_22 = arith.constant dense<0.000000e+00> : vector<8x128xf32>
    %57 = tpu.matmul %54, %55, %cst_22 {dimension_numbers = #tpu.dot_dimension_numbers<[1], [0], [0], [1], [0, 0, 1, 1], [], []>} : vector<8x32xbf16>, vector<32x128xbf16>, vector<8x128xf32> -> vector<8x128xf32>
    %58 = vector.broadcast %56 : vector<1x128xf32> to vector<8x128xf32>
    %59 = arith.addf %57, %58 : vector<8x128xf32>
    %60 = vector.extract_strided_slice %59 {offsets = [0, 0], sizes = [8, 32], strides = [1, 1]} : vector<8x128xf32> to vector<8x32xf32>
    %61 = vector.extract_strided_slice %59 {offsets = [0, 32], sizes = [8, 32], strides = [1, 1]} : vector<8x128xf32> to vector<8x32xf32>
    %62 = vector.extract_strided_slice %59 {offsets = [0, 64], sizes = [8, 32], strides = [1, 1]} : vector<8x128xf32> to vector<8x32xf32>
    %63 = vector.extract_strided_slice %59 {offsets = [0, 96], sizes = [8, 32], strides = [1, 1]} : vector<8x128xf32> to vector<8x32xf32>
    %64 = arith.truncf %60 : vector<8x32xf32> to vector<8x32xbf16>
    %65 = vector.shape_cast %64 : vector<8x32xbf16> to vector<8x2x16xbf16>
    %66 = tpu.transpose %65, [1, 0, 2] : vector<8x2x16xbf16> -> vector<2x8x16xbf16>
    %67 = arith.truncf %61 : vector<8x32xf32> to vector<8x32xbf16>
    %68 = vector.shape_cast %67 : vector<8x32xbf16> to vector<8x2x16xbf16>
    %69 = tpu.transpose %68, [1, 0, 2] : vector<8x2x16xbf16> -> vector<2x8x16xbf16>
    %70 = arith.truncf %62 : vector<8x32xf32> to vector<8x32xbf16>
    %71 = vector.shape_cast %70 : vector<8x32xbf16> to vector<8x2x16xbf16>
    %72 = tpu.transpose %71, [1, 0, 2] : vector<8x2x16xbf16> -> vector<2x8x16xbf16>
    "tpu.trace_start"() <{level = 10 : i32, message = "hqc,hkc->hqk"}> : () -> ()
    %cst_23 = arith.constant dense<0.000000e+00> : vector<2x8x8xf32>
    %73 = tpu.matmul %66, %69, %cst_23 {dimension_numbers = #tpu.dot_dimension_numbers<[2], [2], [1], [1], [0, 0, 0, 1, 1, 1], [0], [0]>} : vector<2x8x16xbf16>, vector<2x8x16xbf16>, vector<2x8x8xf32> -> vector<2x8x8xf32>
    "tpu.trace_stop"() : () -> ()
    %cst_24 = arith.constant 2.500000e-01 : f32
    %74 = vector.broadcast %cst_24 : f32 to vector<2x8x8xf32>
    %75 = arith.mulf %73, %74 : vector<2x8x8xf32>
    %76 = vector.shape_cast %6 : vector<8x8xf32> to vector<1x8x8xf32>
    %77 = vector.broadcast %76 : vector<1x8x8xf32> to vector<2x8x8xf32>
    %78 = arith.addf %75, %77 : vector<2x8x8xf32>
    %cst_25 = arith.constant dense<0xFF800000> : vector<2x8xf32>
    %79 = vector.multi_reduction <maximumf>, %78, %cst_25 [2] : vector<2x8x8xf32> to vector<2x8xf32>
    %80 = vector.shape_cast %79 : vector<2x8xf32> to vector<2x8x1xf32>
    %81 = vector.broadcast %80 : vector<2x8x1xf32> to vector<2x8x8xf32>
    %82 = arith.subf %78, %81 : vector<2x8x8xf32>
    %83 = math.exp %82 : vector<2x8x8xf32>
    %cst_26 = arith.constant dense<0.000000e+00> : vector<2x8xf32>
    %84 = vector.multi_reduction <add>, %83, %cst_26 [2] : vector<2x8x8xf32> to vector<2x8xf32>
    %85 = vector.shape_cast %84 : vector<2x8xf32> to vector<2x8x1xf32>
    %86 = arith.truncf %83 : vector<2x8x8xf32> to vector<2x8x8xbf16>
    "tpu.trace_start"() <{level = 10 : i32, message = "hqk,hkc->hqc"}> : () -> ()
    %cst_27 = arith.constant dense<0.000000e+00> : vector<2x8x16xf32>
    %87 = tpu.matmul %86, %72, %cst_27 {dimension_numbers = #tpu.dot_dimension_numbers<[2], [1], [1], [2], [0, 0, 0, 1, 1, 2], [0], [0]>} : vector<2x8x8xbf16>, vector<2x8x16xbf16>, vector<2x8x16xf32> -> vector<2x8x16xf32>
    %cst_28 = arith.constant -1.000000e+29 : f32
    "tpu.trace_stop"() : () -> ()
    %88 = vector.broadcast %cst_28 : f32 to vector<2x8x1xf32>
    %89 = arith.cmpf ogt, %80, %88 : vector<2x8x1xf32>
    %90 = tpu.reciprocal %85 {approx = true} : vector<2x8x1xf32> -> vector<2x8x1xf32>
    %cst_29 = arith.constant 0.000000e+00 : f32
    %91 = vector.broadcast %cst_29 : f32 to vector<2x8x1xf32>
    %92 = arith.select %89, %90, %91 : vector<2x8x1xi1>, vector<2x8x1xf32>
    %93 = vector.broadcast %92 : vector<2x8x1xf32> to vector<2x8x16xf32>
    %94 = arith.mulf %87, %93 : vector<2x8x16xf32>
    %95 = tpu.transpose %94, [1, 0, 2] : vector<2x8x16xf32> -> vector<8x2x16xf32>
    %96 = vector.shape_cast %95 : vector<8x2x16xf32> to vector<8x32xf32>
    %97 = arith.addf %96, %63 : vector<8x32xf32>
    %cst_30 = arith.constant 0.000000e+00 : f32
    %98 = vector.broadcast %cst_30 : f32 to vector<8x32xf32>
    %99 = arith.maximumf %97, %98 : vector<8x32xf32>
    %c0_31 = arith.constant 0 : index
    %c0_32 = arith.constant 0 : index
    %100 = vector.load %arg17[%c0_31, %c0_32] : memref<8x32xf32, #tpu.memory_space<vmem>>, vector<8x32xf32>
    tpu.vector_store %arg17[%c0_31, %c0_32], %99 {strides = array<i32>} : memref<8x32xf32, #tpu.memory_space<vmem>>, vector<8x32xf32>,
    %c0_33 = arith.constant 0 : index
    %101 = memref.load %arg2[%c0_33] : memref<10xi32, #tpu.memory_space<smem>>
    %102 = arith.index_cast %101 : i32 to index
    %c0_34 = arith.constant 0 : index
    %103 = vector.load %arg17[%102, %c0_34] : memref<8x32xf32, #tpu.memory_space<vmem>>, vector<1x32xf32>
    %c0_35 = arith.constant 0 : index
    %c0_36 = arith.constant 0 : index
    %104 = vector.load %arg18[%c0_35, %c0_36] : memref<10x32xf32, #tpu.memory_space<vmem>>, vector<1x32xf32>
    tpu.vector_store %arg18[%c0_35, %c0_36], %103 {strides = array<i32>} : memref<10x32xf32, #tpu.memory_space<vmem>>, vector<1x32xf32>,
    %c1 = arith.constant 1 : index
    %105 = memref.load %arg2[%c1] : memref<10xi32, #tpu.memory_space<smem>>
    %106 = arith.index_cast %105 : i32 to index
    %c0_37 = arith.constant 0 : index
    %107 = vector.load %arg17[%106, %c0_37] : memref<8x32xf32, #tpu.memory_space<vmem>>, vector<1x32xf32>
    %c1_38 = arith.constant 1 : index
    %c0_39 = arith.constant 0 : index
    %108 = vector.load %arg18[%c1_38, %c0_39] : memref<10x32xf32, #tpu.memory_space<vmem>>, vector<1x32xf32>
    tpu.vector_store %arg18[%c1_38, %c0_39], %107 {strides = array<i32>} : memref<10x32xf32, #tpu.memory_space<vmem>>, vector<1x32xf32>,
    %c2 = arith.constant 2 : index
    %109 = memref.load %arg2[%c2] : memref<10xi32, #tpu.memory_space<smem>>
    %110 = arith.index_cast %109 : i32 to index
    %c0_40 = arith.constant 0 : index
    %111 = vector.load %arg17[%110, %c0_40] : memref<8x32xf32, #tpu.memory_space<vmem>>, vector<1x32xf32>
    %c2_41 = arith.constant 2 : index
    %c0_42 = arith.constant 0 : index
    %112 = vector.load %arg18[%c2_41, %c0_42] : memref<10x32xf32, #tpu.memory_space<vmem>>, vector<1x32xf32>
    tpu.vector_store %arg18[%c2_41, %c0_42], %111 {strides = array<i32>} : memref<10x32xf32, #tpu.memory_space<vmem>>, vector<1x32xf32>,
    %c3 = arith.constant 3 : index
    %113 = memref.load %arg2[%c3] : memref<10xi32, #tpu.memory_space<smem>>
    %114 = arith.index_cast %113 : i32 to index
    %c0_43 = arith.constant 0 : index
    %115 = vector.load %arg17[%114, %c0_43] : memref<8x32xf32, #tpu.memory_space<vmem>>, vector<1x32xf32>
    %c3_44 = arith.constant 3 : index
    %c0_45 = arith.constant 0 : index
    %116 = vector.load %arg18[%c3_44, %c0_45] : memref<10x32xf32, #tpu.memory_space<vmem>>, vector<1x32xf32>
    tpu.vector_store %arg18[%c3_44, %c0_45], %115 {strides = array<i32>} : memref<10x32xf32, #tpu.memory_space<vmem>>, vector<1x32xf32>,
    %c4 = arith.constant 4 : index
    %117 = memref.load %arg2[%c4] : memref<10xi32, #tpu.memory_space<smem>>
    %118 = arith.index_cast %117 : i32 to index
    %c0_46 = arith.constant 0 : index
    %119 = vector.load %arg17[%118, %c0_46] : memref<8x32xf32, #tpu.memory_space<vmem>>, vector<1x32xf32>
    %c4_47 = arith.constant 4 : index
    %c0_48 = arith.constant 0 : index
    %120 = vector.load %arg18[%c4_47, %c0_48] : memref<10x32xf32, #tpu.memory_space<vmem>>, vector<1x32xf32>
    tpu.vector_store %arg18[%c4_47, %c0_48], %119 {strides = array<i32>} : memref<10x32xf32, #tpu.memory_space<vmem>>, vector<1x32xf32>,
    %c5 = arith.constant 5 : index
    %121 = memref.load %arg2[%c5] : memref<10xi32, #tpu.memory_space<smem>>
    %122 = arith.index_cast %121 : i32 to index
    %c0_49 = arith.constant 0 : index
    %123 = vector.load %arg17[%122, %c0_49] : memref<8x32xf32, #tpu.memory_space<vmem>>, vector<1x32xf32>
    %c5_50 = arith.constant 5 : index
    %c0_51 = arith.constant 0 : index
    %124 = vector.load %arg18[%c5_50, %c0_51] : memref<10x32xf32, #tpu.memory_space<vmem>>, vector<1x32xf32>
    tpu.vector_store %arg18[%c5_50, %c0_51], %123 {strides = array<i32>} : memref<10x32xf32, #tpu.memory_space<vmem>>, vector<1x32xf32>,
    %c6 = arith.constant 6 : index
    %125 = memref.load %arg2[%c6] : memref<10xi32, #tpu.memory_space<smem>>
    %126 = arith.index_cast %125 : i32 to index
    %c0_52 = arith.constant 0 : index
    %127 = vector.load %arg17[%126, %c0_52] : memref<8x32xf32, #tpu.memory_space<vmem>>, vector<1x32xf32>
    %c6_53 = arith.constant 6 : index
    %c0_54 = arith.constant 0 : index
    %128 = vector.load %arg18[%c6_53, %c0_54] : memref<10x32xf32, #tpu.memory_space<vmem>>, vector<1x32xf32>
    tpu.vector_store %arg18[%c6_53, %c0_54], %127 {strides = array<i32>} : memref<10x32xf32, #tpu.memory_space<vmem>>, vector<1x32xf32>,
    %c7 = arith.constant 7 : index
    %129 = memref.load %arg2[%c7] : memref<10xi32, #tpu.memory_space<smem>>
    %130 = arith.index_cast %129 : i32 to index
    %c0_55 = arith.constant 0 : index
    %131 = vector.load %arg17[%130, %c0_55] : memref<8x32xf32, #tpu.memory_space<vmem>>, vector<1x32xf32>
    %c7_56 = arith.constant 7 : index
    %c0_57 = arith.constant 0 : index
    %132 = vector.load %arg18[%c7_56, %c0_57] : memref<10x32xf32, #tpu.memory_space<vmem>>, vector<1x32xf32>
    tpu.vector_store %arg18[%c7_56, %c0_57], %131 {strides = array<i32>} : memref<10x32xf32, #tpu.memory_space<vmem>>, vector<1x32xf32>,
    %c8 = arith.constant 8 : index
    %133 = memref.load %arg2[%c8] : memref<10xi32, #tpu.memory_space<smem>>
    %134 = arith.index_cast %133 : i32 to index
    %c0_58 = arith.constant 0 : index
    %135 = vector.load %arg17[%134, %c0_58] : memref<8x32xf32, #tpu.memory_space<vmem>>, vector<1x32xf32>
    %c8_59 = arith.constant 8 : index
    %c0_60 = arith.constant 0 : index
    %136 = vector.load %arg18[%c8_59, %c0_60] : memref<10x32xf32, #tpu.memory_space<vmem>>, vector<1x32xf32>
    tpu.vector_store %arg18[%c8_59, %c0_60], %135 {strides = array<i32>} : memref<10x32xf32, #tpu.memory_space<vmem>>, vector<1x32xf32>,
    %c9 = arith.constant 9 : index
    %137 = memref.load %arg2[%c9] : memref<10xi32, #tpu.memory_space<smem>>
    %138 = arith.index_cast %137 : i32 to index
    %c0_61 = arith.constant 0 : index
    %139 = vector.load %arg17[%138, %c0_61] : memref<8x32xf32, #tpu.memory_space<vmem>>, vector<1x32xf32>
    %c9_62 = arith.constant 9 : index
    %c0_63 = arith.constant 0 : index
    %140 = vector.load %arg18[%c9_62, %c0_63] : memref<10x32xf32, #tpu.memory_space<vmem>>, vector<1x32xf32>
    tpu.vector_store %arg18[%c9_62, %c0_63], %139 {strides = array<i32>} : memref<10x32xf32, #tpu.memory_space<vmem>>, vector<1x32xf32>,
    %c0_64 = arith.constant 0 : index
    %c0_65 = arith.constant 0 : index
    %141 = vector.load %arg18[%c0_64, %c0_65] : memref<10x32xf32, #tpu.memory_space<vmem>>, vector<10x32xf32>
    %142 = vector.shape_cast %141 : vector<10x32xf32> to vector<2x5x32xf32>
    %143 = arith.truncf %141 : vector<10x32xf32> to vector<10x32xbf16>
    %c0_66 = arith.constant 0 : index
    %c0_67 = arith.constant 0 : index
    %144 = vector.load %arg8[%c0_66, %c0_67] : memref<32x64xbf16, #tpu.memory_space<vmem>>, vector<32x64xbf16>
    %cst_68 = arith.constant dense<0.000000e+00> : vector<10x64xf32>
    %145 = tpu.matmul %143, %144, %cst_68 {dimension_numbers = #tpu.dot_dimension_numbers<[1], [0], [0], [1], [0, 0, 1, 1], [], []>} : vector<10x32xbf16>, vector<32x64xbf16>, vector<10x64xf32> -> vector<10x64xf32>
    %146 = vector.shape_cast %145 : vector<10x64xf32> to vector<2x5x64xf32>
    %147 = vector.extract_strided_slice %146 {offsets = [0, 0, 0], sizes = [2, 5, 32], strides = [1, 1, 1]} : vector<2x5x64xf32> to vector<2x5x32xf32>
    %148 = vector.extract_strided_slice %146 {offsets = [0, 0, 32], sizes = [2, 1, 32], strides = [1, 1, 1]} : vector<2x5x64xf32> to vector<2x1x32xf32>
    %149 = vector.shape_cast %148 : vector<2x1x32xf32> to vector<2x32xf32>
    %150 = vector.shape_cast %149 : vector<2x32xf32> to vector<2x1x32xf32>
    %151 = vector.broadcast %150 : vector<2x1x32xf32> to vector<2x5x32xf32>
    %152 = arith.addf %151, %147 : vector<2x5x32xf32>
    %c0_69 = arith.constant 0 : index
    %c0_70 = arith.constant 0 : index
    %153 = vector.load %arg9[%c0_69, %c0_70] : memref<1x32xf32, #tpu.memory_space<vmem>>, vector<1x32xf32>
    %154 = vector.shape_cast %153 : vector<1x32xf32> to vector<1x1x32xf32>
    %155 = vector.broadcast %154 : vector<1x1x32xf32> to vector<2x5x32xf32>
    %156 = arith.addf %152, %155 : vector<2x5x32xf32>
    %cst_71 = arith.constant 0.000000e+00 : f32
    %157 = vector.broadcast %cst_71 : f32 to vector<2x5x32xf32>
    %158 = arith.maximumf %156, %157 : vector<2x5x32xf32>
    %c0_72 = arith.constant 0 : index
    %c0_73 = arith.constant 0 : index
    %159 = vector.load %arg10[%c0_72, %c0_73] : memref<1x32xf32, #tpu.memory_space<vmem>>, vector<1x32xf32>
    %160 = vector.shape_cast %159 : vector<1x32xf32> to vector<1x1x32xf32>
    %161 = vector.broadcast %160 : vector<1x1x32xf32> to vector<2x5x32xf32>
    %162 = arith.mulf %158, %161 : vector<2x5x32xf32>
    %cst_74 = arith.constant dense<0.000000e+00> : vector<2x5xf32>
    %163 = vector.multi_reduction <add>, %162, %cst_74 [2] : vector<2x5x32xf32> to vector<2x5xf32>
    %164 = vector.shape_cast %163 : vector<2x5xf32> to vector<2x5x1xf32>
    %c0_75 = arith.constant 0 : index
    %c0_76 = arith.constant 0 : index
    %165 = vector.load %arg11[%c0_75, %c0_76] : memref<1x1xf32, #tpu.memory_space<vmem>>, vector<1x1xf32>
    %166 = vector.shape_cast %165 : vector<1x1xf32> to vector<1x1x1xf32>
    %167 = vector.broadcast %166 : vector<1x1x1xf32> to vector<2x5x1xf32>
    %168 = arith.addf %164, %167 : vector<2x5x1xf32>
    %c0_77 = arith.constant 0 : index
    %c0_78 = arith.constant 0 : index
    %169 = vector.load %arg3[%c0_77, %c0_78] : memref<2x5xf32, #tpu.memory_space<vmem>>, vector<2x5xf32>
    %170 = vector.shape_cast %169 : vector<2x5xf32> to vector<2x5x1xf32>
    %cst_79 = arith.constant 0.000000e+00 : f32
    %171 = vector.broadcast %cst_79 : f32 to vector<2x5x1xf32>
    %172 = arith.cmpf ogt, %170, %171 : vector<2x5x1xf32>
    %cst_80 = arith.constant 0.000000e+00 : f32
    %173 = vector.shape_cast %172 : vector<2x5x1xi1> to vector<2x5x1xi1>
    %174 = vector.broadcast %173 : vector<2x5x1xi1> to vector<2x5x32xi1>
    %175 = vector.broadcast %cst_80 : f32 to vector<2x5x32xf32>
    %176 = arith.select %174, %175, %142 : vector<2x5x32xi1>, vector<2x5x32xf32>
    %cst_81 = arith.constant -1.000000e+30 : f32
    %177 = vector.broadcast %cst_81 : f32 to vector<2x5x1xf32>
    %178 = arith.select %172, %177, %168 : vector<2x5x1xi1>, vector<2x5x1xf32>
    %cst_82 = arith.constant dense<0xFF800000> : vector<2x1xf32>
    %179 = vector.multi_reduction <maximumf>, %178, %cst_82 [1] : vector<2x5x1xf32> to vector<2x1xf32>
    %180 = vector.shape_cast %179 : vector<2x1xf32> to vector<2x1x1xf32>
    %181 = vector.broadcast %180 : vector<2x1x1xf32> to vector<2x5x1xf32>
    %182 = arith.subf %178, %181 : vector<2x5x1xf32>
    %183 = math.exp %182 : vector<2x5x1xf32>
    %cst_83 = arith.constant dense<0.000000e+00> : vector<2x1xf32>
    %184 = vector.multi_reduction <add>, %183, %cst_83 [1] : vector<2x5x1xf32> to vector<2x1xf32>
    %185 = vector.shape_cast %184 : vector<2x1xf32> to vector<2x1x1xf32>
    %186 = tpu.reciprocal %185 {approx = true} : vector<2x1x1xf32> -> vector<2x1x1xf32>
    %187 = vector.broadcast %186 : vector<2x1x1xf32> to vector<2x5x1xf32>
    %188 = arith.mulf %183, %187 : vector<2x5x1xf32>
    %189 = vector.broadcast %188 : vector<2x5x1xf32> to vector<2x5x32xf32>
    %190 = arith.mulf %176, %189 : vector<2x5x32xf32>
    %cst_84 = arith.constant dense<0.000000e+00> : vector<2x32xf32>
    %191 = vector.multi_reduction <add>, %190, %cst_84 [1] : vector<2x5x32xf32> to vector<2x32xf32>
    %192 = arith.truncf %191 : vector<2x32xf32> to vector<2x32xbf16>
    %c0_85 = arith.constant 0 : index
    %c0_86 = arith.constant 0 : index
    %193 = vector.load %arg12[%c0_85, %c0_86] : memref<32x32xbf16, #tpu.memory_space<vmem>>, vector<32x32xbf16>
    %cst_87 = arith.constant dense<0.000000e+00> : vector<2x32xf32>
    %194 = tpu.matmul %192, %193, %cst_87 {dimension_numbers = #tpu.dot_dimension_numbers<[1], [0], [0], [1], [0, 0, 1, 1], [], []>} : vector<2x32xbf16>, vector<32x32xbf16>, vector<2x32xf32> -> vector<2x32xf32>
    %c0_88 = arith.constant 0 : index
    %c0_89 = arith.constant 0 : index
    %195 = vector.load %arg13[%c0_88, %c0_89] : memref<1x32xf32, #tpu.memory_space<vmem>>, vector<1x32xf32>
    %196 = vector.broadcast %195 : vector<1x32xf32> to vector<2x32xf32>
    %197 = arith.addf %194, %196 : vector<2x32xf32>
    %198 = math.tanh %197 : vector<2x32xf32>
    %199 = arith.truncf %198 : vector<2x32xf32> to vector<2x32xbf16>
    %c0_90 = arith.constant 0 : index
    %c0_91 = arith.constant 0 : index
    %200 = vector.load %arg14[%c0_90, %c0_91] : memref<32x3xbf16, #tpu.memory_space<vmem>>, vector<32x3xbf16>
    %cst_92 = arith.constant dense<0.000000e+00> : vector<2x3xf32>
    %201 = tpu.matmul %199, %200, %cst_92 {dimension_numbers = #tpu.dot_dimension_numbers<[1], [0], [0], [1], [0, 0, 1, 1], [], []>} : vector<2x32xbf16>, vector<32x3xbf16>, vector<2x3xf32> -> vector<2x3xf32>
    %c0_93 = arith.constant 0 : index
    %c0_94 = arith.constant 0 : index
    %202 = vector.load %arg15[%c0_93, %c0_94] : memref<1x3xf32, #tpu.memory_space<vmem>>, vector<1x3xf32>
    %203 = vector.broadcast %202 : vector<1x3xf32> to vector<2x3xf32>
    %204 = arith.addf %201, %203 : vector<2x3xf32>
    %cst_95 = arith.constant dense<0xFF800000> : vector<2xf32>
    %205 = vector.multi_reduction <maximumf>, %204, %cst_95 [1] : vector<2x3xf32> to vector<2xf32>
    %206 = vector.shape_cast %205 : vector<2xf32> to vector<2x1xf32>
    %207 = vector.broadcast %206 : vector<2x1xf32> to vector<2x3xf32>
    %208 = arith.subf %204, %207 : vector<2x3xf32>
    %209 = math.exp %208 : vector<2x3xf32>
    %cst_96 = arith.constant dense<0.000000e+00> : vector<2xf32>
    %210 = vector.multi_reduction <add>, %209, %cst_96 [1] : vector<2x3xf32> to vector<2xf32>
    %211 = vector.shape_cast %210 : vector<2xf32> to vector<2x1xf32>
    %212 = math.log %211 : vector<2x1xf32>
    %213 = arith.addf %212, %206 : vector<2x1xf32>
    %214 = vector.broadcast %213 : vector<2x1xf32> to vector<2x3xf32>
    %215 = arith.subf %204, %214 : vector<2x3xf32>
    %c0_97 = arith.constant 0 : index
    %c0_98 = arith.constant 0 : index
    %216 = vector.load %arg16[%c0_97, %c0_98] : memref<2x3xf32, #tpu.memory_space<vmem>>, vector<2x3xf32>
    tpu.vector_store %arg16[%c0_97, %c0_98], %215 {strides = array<i32>} : memref<2x3xf32, #tpu.memory_space<vmem>>, vector<2x3xf32>,
    return
  }
}

</mosaic_0001>

<llo_original>
// kernel: tpu_custom_call.1
$region0: #{tpu_custom_call.1}
  #allocation0 [shape = 'u32[]', space=smem, size = 0x4, offset = 0x4, fixed_abs, tag = 'smem constant byte address 0x4 - core index']
  #allocation1 [shape = 'u32[72,128]{1,0:T(1,128)}', space=vmem, size = 0x9000, scoped, tag = 'internal scratch']
  #allocation2 [shape = 'f32[8,32]{1,0:T(8,128)}', space=vmem, size = 0x1000, scoped, tag = 'scratch operand']
  #allocation3 [shape = 'f32[10,32]{1,0:T(8,128)}', space=vmem, size = 0x2000, scoped, tag = 'scratch operand']
  #allocation4 [shape = 'f32[1,1]{1,0:T(1,128)S(1)}', space=vmem, size = 0x200, scoped, tag = 'scoped memory for tpu_custom_call.1']
  %s0 = inlined_call_operand.hbm [shape: f32[8,32], index: 0, kind: input, shape index: {}]
  %s1 = inlined_call_operand.vmem [shape: s8[8,8], index: 1, kind: input, shape index: {}]
  %s2 = inlined_call_operand.hbm [shape: s32[10], index: 2, kind: input, shape index: {}]
  %s3 = inlined_call_operand.vmem [shape: f32[2,5], index: 3, kind: input, shape index: {}]
  %s4 = inlined_call_operand.vmem [shape: bf16[32,128], index: 4, kind: input, shape index: {}]
  %s5 = inlined_call_operand.vmem [shape: f32[1,128], index: 5, kind: input, shape index: {}]
  %s6 = inlined_call_operand.hbm [shape: bf16[32,128], index: 6, kind: input, shape index: {}]
  %s7 = inlined_call_operand.vmem [shape: f32[1,128], index: 7, kind: input, shape index: {}]
  %s8 = inlined_call_operand.hbm [shape: bf16[32,64], index: 8, kind: input, shape index: {}]
  %s9 = inlined_call_operand.vmem [shape: f32[1,32], index: 9, kind: input, shape index: {}]
  %s10 = inlined_call_operand.vmem [shape: f32[1,32], index: 10, kind: input, shape index: {}]
  %s11 = inlined_call_operand.<no memory space> [shape: f32[1,1], index: 11, kind: input, shape index: {}]
  %s12 = inlined_call_operand.hbm [shape: bf16[32,32], index: 12, kind: input, shape index: {}]
  %s13 = inlined_call_operand.vmem [shape: f32[1,32], index: 13, kind: input, shape index: {}]
  %s14 = inlined_call_operand.vmem [shape: bf16[32,3], index: 14, kind: input, shape index: {}]
  %s15 = inlined_call_operand.vmem [shape: f32[1,3], index: 15, kind: input, shape index: {}]
  %s16 = inlined_call_operand.hbm [shape: f32[2,3], index: 16, kind: output, shape index: {}]
  %s17 = sld [smem:[#allocation0]]
  $region94: #{tpu_custom_call.1} parent=0
    _
  %s19 = ssub.s32 1, %s17
  %s20 = scalar_select 0, %s19, %s17
  %v21 = vstv %s11
  %22 = vst [vmem:[#allocation4] sm:$0x1] %v21
  $region1: #{tpu_custom_call.1} parent=0
    #allocation5 [shape = 'u8[4096]{0}', space=vmem, size = 0x1000, scoped, tag = 'input window, operand 0, single buffered']
    #allocation6 [shape = 's32[1]{0}', space=sflag, size = 0x4, scoped, tag = 'scoped memory for tpu_custom_call.1']
    #allocation7 [shape = 's32[1]{0}', space=sflag, size = 0x4, scoped, tag = 'scoped memory for tpu_custom_call.1']
    #allocation8 [shape = 's32[1]{0}', space=sflag, size = 0x4, scoped, tag = 'scoped memory for tpu_custom_call.1']
    #allocation9 [shape = 'u8[512]{0}', space=smem, size = 0x200, scoped, tag = 'input window, operand 2, single buffered']
    #allocation10 [shape = 'u8[8192]{0}', space=vmem, size = 0x2000, scoped, tag = 'input window, operand 6, single buffered']
    #allocation11 [shape = 's32[1]{0}', space=sflag, size = 0x4, scoped, tag = 'scoped memory for tpu_custom_call.1']
    #allocation12 [shape = 'u8[8192]{0}', space=vmem, size = 0x2000, scoped, tag = 'input window, operand 8, single buffered']
    #allocation13 [shape = 'u8[8192]{0}', space=vmem, size = 0x2000, scoped, tag = 'input window, operand 12, single buffered']
    #allocation14 [shape = 's32[1]{0}', space=sflag, size = 0x4, scoped, tag = 'scoped memory for tpu_custom_call.1']
    #allocation15 [shape = 'u8[1024]{0}', space=vmem, size = 0x400, scoped, tag = 'output window, operand 0, single buffered']
    %23 = vsyncpa [#allocation6], 0
    %24 = vsyncpa [#allocation8], 0
    %25 = vsyncpa [#allocation11], 0
    %26 = vsyncpa [#allocation14], 0
    %27 = vsyncpa [#allocation7], 0
    // Predicated region
    $region2: #{tpu_custom_call.1} parent=1 // pred_check
      _
    $region3: #{tpu_custom_call.1} parent=1 // pred_check_branch
      %29 = sbr.rel (0) target = $region5
    $region4: #{tpu_custom_call.1} parent=1 // pred_region
      %31 = vsyncadd [#allocation6], 0
      %s33 = sshll.u32 %s0, 4
      %s34 = int_to_ptr.hbm [resolvable:$true] %s33
      %s35 = sshll.u32 [#allocation5], 4
      %s36 = int_to_ptr.vmem [resolvable:$true] %s35
      %38 = dma.hbm_to_vmem [thread:$0]  %s34, 128, %s36, [#allocation6]
    $region5: #{tpu_custom_call.1} parent=1 // pred_fallthru
      _
    // Predicated region
    $region6: #{tpu_custom_call.1} parent=1 // pred_check
      _
    $region7: #{tpu_custom_call.1} parent=1 // pred_check_branch
      %40 = sbr.rel (0) target = $region9
    $region8: #{tpu_custom_call.1} parent=1 // pred_region
      _
    $region9: #{tpu_custom_call.1} parent=1 // pred_fallthru
      _
    // Predicated region
    $region10: #{tpu_custom_call.1} parent=1 // pred_check
      _
    $region11: #{tpu_custom_call.1} parent=1 // pred_check_branch
      %42 = sbr.rel (0) target = $region13
    $region12: #{tpu_custom_call.1} parent=1 // pred_region
      %44 = vsyncadd [#allocation8], 0
      %s46 = sshll.u32 %s2, 4
      %s47 = int_to_ptr.hbm [resolvable:$true] %s46
      %49 = dma.hbm_to_smem %s47, 16, [#allocation9], [#allocation8]
    $region13: #{tpu_custom_call.1} parent=1 // pred_fallthru
      _
    // Predicated region
    $region14: #{tpu_custom_call.1} parent=1 // pred_check
      _
    $region15: #{tpu_custom_call.1} parent=1 // pred_check_branch
      %51 = sbr.rel (0) target = $region17
    $region16: #{tpu_custom_call.1} parent=1 // pred_region
      _
    $region17: #{tpu_custom_call.1} parent=1 // pred_fallthru
      _
    // Predicated region
    $region18: #{tpu_custom_call.1} parent=1 // pred_check
      _
    $region19: #{tpu_custom_call.1} parent=1 // pred_check_branch
      %53 = sbr.rel (0) target = $region21
    $region20: #{tpu_custom_call.1} parent=1 // pred_region
      _
    $region21: #{tpu_custom_call.1} parent=1 // pred_fallthru
      _
    // Predicated region
    $region22: #{tpu_custom_call.1} parent=1 // pred_check
      _
    $region23: #{tpu_custom_call.1} parent=1 // pred_check_branch
      %55 = sbr.rel (0) target = $region25
    $region24: #{tpu_custom_call.1} parent=1 // pred_region
      _
    $region25: #{tpu_custom_call.1} parent=1 // pred_fallthru
      _
    // Predicated region
    $region26: #{tpu_custom_call.1} parent=1 // pred_check
      _
    $region27: #{tpu_custom_call.1} parent=1 // pred_check_branch
      %57 = sbr.rel (0) target = $region29
    $region28: #{tpu_custom_call.1} parent=1 // pred_region
      %59 = vsyncadd [#allocation11], 0
      %s60 = sshll.u32 %s6, 4
      %s61 = int_to_ptr.hbm [resolvable:$true] %s60
      %s62 = sshll.u32 [#allocation10], 4
      %s63 = int_to_ptr.vmem [resolvable:$true] %s62
      %68 = dma.hbm_to_vmem [thread:$0]  %s61, 256, %s63, [#allocation11], 64, 64, 4
    $region29: #{tpu_custom_call.1} parent=1 // pred_fallthru
      _
    // Predicated region
    $region30: #{tpu_custom_call.1} parent=1 // pred_check
      _
    $region31: #{tpu_custom_call.1} parent=1 // pred_check_branch
      %70 = sbr.rel (0) target = $region33
    $region32: #{tpu_custom_call.1} parent=1 // pred_region
      _
    $region33: #{tpu_custom_call.1} parent=1 // pred_fallthru
      _
    // Predicated region
    $region34: #{tpu_custom_call.1} parent=1 // pred_check
      _
    $region35: #{tpu_custom_call.1} parent=1 // pred_check_branch
      %72 = sbr.rel (0) target = $region37
    $region36: #{tpu_custom_call.1} parent=1 // pred_region
      %74 = vsyncadd [#allocation11], 0
      %s75 = sshll.u32 %s8, 4
      %s76 = int_to_ptr.hbm [resolvable:$true] %s75
      %s77 = sshll.u32 [#allocation12], 4
      %s78 = int_to_ptr.vmem [resolvable:$true] %s77
      %83 = dma.hbm_to_vmem [thread:$0]  %s76, 256, %s78, [#allocation11], 64, 64, 4
    $region37: #{tpu_custom_call.1} parent=1 // pred_fallthru
      _
    // Predicated region
    $region38: #{tpu_custom_call.1} parent=1 // pred_check
      _
    $region39: #{tpu_custom_call.1} parent=1 // pred_check_branch
      %85 = sbr.rel (0) target = $region41
    $region40: #{tpu_custom_call.1} parent=1 // pred_region
      _
    $region41: #{tpu_custom_call.1} parent=1 // pred_fallthru
      _
    // Predicated region
    $region42: #{tpu_custom_call.1} parent=1 // pred_check
      _
    $region43: #{tpu_custom_call.1} parent=1 // pred_check_branch
      %87 = sbr.rel (0) target = $region45
    $region44: #{tpu_custom_call.1} parent=1 // pred_region
      _
    $region45: #{tpu_custom_call.1} parent=1 // pred_fallthru
      _
    // Predicated region
    $region46: #{tpu_custom_call.1} parent=1 // pred_check
      _
    $region47: #{tpu_custom_call.1} parent=1 // pred_check_branch
      %89 = sbr.rel (0) target = $region49
    $region48: #{tpu_custom_call.1} parent=1 // pred_region
      _
    $region49: #{tpu_custom_call.1} parent=1 // pred_fallthru
      _
    // Predicated region
    $region50: #{tpu_custom_call.1} parent=1 // pred_check
      _
    $region51: #{tpu_custom_call.1} parent=1 // pred_check_branch
      %91 = sbr.rel (0) target = $region53
    $region52: #{tpu_custom_call.1} parent=1 // pred_region
      %93 = vsyncadd [#allocation14], 0
      %s94 = sshll.u32 %s12, 4
      %s95 = int_to_ptr.hbm [resolvable:$true] %s94
      %s96 = sshll.u32 [#allocation13], 4
      %s97 = int_to_ptr.vmem [resolvable:$true] %s96
      %102 = dma.hbm_to_vmem [thread:$0]  %s95, 256, %s97, [#allocation14], 64, 64, 4
    $region53: #{tpu_custom_call.1} parent=1 // pred_fallthru
      _
    // Predicated region
    $region54: #{tpu_custom_call.1} parent=1 // pred_check
      _
    $region55: #{tpu_custom_call.1} parent=1 // pred_check_branch
      %104 = sbr.rel (0) target = $region57
    $region56: #{tpu_custom_call.1} parent=1 // pred_region
      _
    $region57: #{tpu_custom_call.1} parent=1 // pred_fallthru
      _
    // Predicated region
    $region58: #{tpu_custom_call.1} parent=1 // pred_check
      _
    $region59: #{tpu_custom_call.1} parent=1 // pred_check_branch
      %106 = sbr.rel (0) target = $region61
    $region60: #{tpu_custom_call.1} parent=1 // pred_region
      _
    $region61: #{tpu_custom_call.1} parent=1 // pred_fallthru
      _
    // Predicated region
    $region62: #{tpu_custom_call.1} parent=1 // pred_check
      _
    $region63: #{tpu_custom_call.1} parent=1 // pred_check_branch
      %108 = sbr.rel (0) target = $region65
    $region64: #{tpu_custom_call.1} parent=1 // pred_region
      _
    $region65: #{tpu_custom_call.1} parent=1 // pred_fallthru
      _
    // Predicated region
    $region66: #{tpu_custom_call.1} parent=1 // pred_check
      _
    $region67: #{tpu_custom_call.1} parent=1 // pred_check_branch
      %110 = sbr.rel (0) target = $region69
    $region68: #{tpu_custom_call.1} parent=1 // pred_region
      %112 = dma.done [#allocation6], 128
    $region69: #{tpu_custom_call.1} parent=1 // pred_fallthru
      _
    // Predicated region
    $region70: #{tpu_custom_call.1} parent=1 // pred_check
      _
    $region71: #{tpu_custom_call.1} parent=1 // pred_check_branch
      %114 = sbr.rel (0) target = $region73
    $region72: #{tpu_custom_call.1} parent=1 // pred_region
      %116 = dma.done [#allocation8], 16
    $region73: #{tpu_custom_call.1} parent=1 // pred_fallthru
      _
    // Predicated region
    $region74: #{tpu_custom_call.1} parent=1 // pred_check
      _
    $region75: #{tpu_custom_call.1} parent=1 // pred_check_branch
      %118 = sbr.rel (0) target = $region77
    $region76: #{tpu_custom_call.1} parent=1 // pred_region
      %120 = dma.done [#allocation11], 256
    $region77: #{tpu_custom_call.1} parent=1 // pred_fallthru
      _
    // Predicated region
    $region78: #{tpu_custom_call.1} parent=1 // pred_check
      _
    $region79: #{tpu_custom_call.1} parent=1 // pred_check_branch
      %122 = sbr.rel (0) target = $region81
    $region80: #{tpu_custom_call.1} parent=1 // pred_region
      %124 = dma.done [#allocation11], 256
    $region81: #{tpu_custom_call.1} parent=1 // pred_fallthru
      _
    // Predicated region
    $region82: #{tpu_custom_call.1} parent=1 // pred_check
      _
    $region83: #{tpu_custom_call.1} parent=1 // pred_check_branch
      %126 = sbr.rel (0) target = $region85
    $region84: #{tpu_custom_call.1} parent=1 // pred_region
      %128 = dma.done [#allocation14], 256
    $region85: #{tpu_custom_call.1} parent=1 // pred_fallthru
      _
    %129 = sfence
    %v131 = vld [vmem:[%s1] sm:$0x3]
    %v132 = vunpack.c.0.s8 %v131
    %v133 = vcvt.s32.f32 %v132
    %vm134 = vcmp.gt.f32.partialorder %v133, 0.0
    %v135 = vsel %vm134, 0.0, -1e+30
    %v136 = vld [vmem:[#allocation5] sm:$0xff]
    %v137 = vpack.c.bf16 %v136, %v136
    %v138 = vld [vmem:[%s4] sm:$0xf]
    %v139 = vld [vmem:[%s4 + $0x4] sm:$0xf]
    %v140 = vld [vmem:[%s4 + $0x8] sm:$0xf]
    %v141 = vld [vmem:[%s4 + $0xc] sm:$0xf]
    %v142 = vld [vmem:[%s5] sm:$0x1]
    %v144 = vperm.slane %v142, 0
    %v150 = vunpack.c.l.b16 %v138
    %v151 = vunpack.c.l.b16 %v139
    %v152 = vunpack.c.l.b16 %v140
    %v153 = vunpack.c.l.b16 %v141
    %v154 = vpack.c.b16 %v151, %v150
    %v155 = vpack.c.b16 %v153, %v152
    %vm158 = vcmask 261120
    %v160 = vsel %vm158, %v137, 0
    %162 = vmatpush.bf16.msra.mxu0 0
    %163 = vmatpush.bf16.msra.mxu0 0
    %164 = vmatpush.bf16.msra.mxu0 0
    %165 = vmatpush.bf16.msra.mxu0 0
    %166 = vmatpush.bf16.msra.mxu0 0
    %167 = vmatpush.bf16.msra.mxu0 0
    %168 = vmatpush.bf16.msra.mxu0 %v155
    %169 = vmatpush.bf16.msra.mxu0 %v154
    %170 = vmatmul.bf16.gmra.mxu0 %v160
    %v171 = vpop.f32.mrf.mxu0
    %v172 = vadd.f32 %v144, %v171
    %v173 = vpop.f32.mrf.mxu0
    %174 = vdwg.mxu0
    %v175 = vpack.c.bf16 %v172, %v172
    %177 = vrot.lane.b32.xlu0 %v175, 112
    %v178 = vpop.permute.xlu0 %177
    %v181 = vpack.i.b16 %v178, %v175
    %v182 = vshrl.u32 %v175, 16
    %v183 = vshrl.u32 %v178, 16
    %v184 = vpack.i.b16 %v183, %v182
    %v187 = vunpack.c.l.s4 1983009808
    %v188 = vunpack.c.0.s8 %v187
    %v189 = vperm.slane %v181, %v188
    %v190 = vrot.slane %v189, 4
    %vm191 = vcmask 1047556
    %v192 = vsel %vm191, 0, %v190
    %v194 = vunpack.c.l.s4 1934713408
    %v195 = vunpack.c.0.s8 %v194
    %v196 = vperm.slane %v189, %v195
    %v198 = vunpack.c.l.s4 1934713408
    %v199 = vunpack.c.0.s8 %v198
    %v200 = vperm.slane %v192, %v199
    %v201 = vrot.slane %v196, 4
    %v202 = vsel %vm191, 0, %v201
    %v203 = vrot.slane %v200, 4
    %v204 = vsel %vm191, 0, %v203
    %v207 = vunpack.c.l.s4 1983009808
    %v208 = vunpack.c.0.s8 %v207
    %v209 = vperm.slane %v184, %v208
    %v210 = vrot.slane %v209, 4
    %v211 = vsel %vm191, 0, %v210
    %v213 = vunpack.c.l.s4 1934713408
    %v214 = vunpack.c.0.s8 %v213
    %v215 = vperm.slane %v209, %v214
    %v217 = vunpack.c.l.s4 1934713408
    %v218 = vunpack.c.0.s8 %v217
    %v219 = vperm.slane %v211, %v218
    %v220 = vrot.slane %v215, 4
    %v221 = vsel %vm191, 0, %v220
    %v222 = vrot.slane %v219, 4
    %v223 = vsel %vm191, 0, %v222
    %v224 = vsel %vm191, %v203, %v196
    %v226 = vunpack.c.l.s4 1983009808
    %v227 = vunpack.c.0.s8 %v226
    %v228 = vperm.slane %v224, %v227
    %v229 = vrot.slane %v204, 4
    %v230 = vsel %vm191, %v229, %v202
    %v232 = vunpack.c.l.s4 1983009808
    %v233 = vunpack.c.0.s8 %v232
    %v234 = vperm.slane %v230, %v233
    %v235 = vrot.slane %v234, 4
    %v236 = vsel %vm191, %v235, %v228
    %v238 = vunpack.c.l.s4 1934713408
    %v239 = vunpack.c.0.s8 %v238
    %v240 = vperm.slane %v236, %v239
    %v241 = vsel %vm191, %v222, %v215
    %v243 = vunpack.c.l.s4 1983009808
    %v244 = vunpack.c.0.s8 %v243
    %v245 = vperm.slane %v241, %v244
    %v246 = vrot.slane %v223, 4
    %v247 = vsel %vm191, %v246, %v221
    %v249 = vunpack.c.l.s4 1983009808
    %v250 = vunpack.c.0.s8 %v249
    %v251 = vperm.slane %v247, %v250
    %v252 = vrot.slane %v251, 4
    %v253 = vsel %vm191, %v252, %v245
    %v255 = vunpack.c.l.s4 1934713408
    %v256 = vunpack.c.0.s8 %v255
    %v257 = vperm.slane %v253, %v256
    %v260 = vpack.i.b16 %v257, %v240
    %v261 = vshrl.u32 %v240, 16
    %v262 = vshrl.u32 %v257, 16
    %v263 = vpack.i.b16 %v262, %v261
    %264 = vrot.lane.b32.xlu0 %v175, 96
    %v265 = vpop.permute.xlu0 %264
    %266 = vrot.lane.b32.xlu0 %v178, 96
    %v267 = vpop.permute.xlu0 %266
    %v270 = vpack.i.b16 %v267, %v265
    %v271 = vshrl.u32 %v265, 16
    %v272 = vshrl.u32 %v267, 16
    %v273 = vpack.i.b16 %v272, %v271
    %v276 = vunpack.c.l.s4 1983009808
    %v277 = vunpack.c.0.s8 %v276
    %v278 = vperm.slane %v270, %v277
    %v279 = vrot.slane %v278, 4
    %v280 = vsel %vm191, 0, %v279
    %v282 = vunpack.c.l.s4 1934713408
    %v283 = vunpack.c.0.s8 %v282
    %v284 = vperm.slane %v278, %v283
    %v286 = vunpack.c.l.s4 1934713408
    %v287 = vunpack.c.0.s8 %v286
    %v288 = vperm.slane %v280, %v287
    %v289 = vrot.slane %v284, 4
    %v290 = vsel %vm191, 0, %v289
    %v291 = vrot.slane %v288, 4
    %v292 = vsel %vm191, 0, %v291
    %v295 = vunpack.c.l.s4 1983009808
    %v296 = vunpack.c.0.s8 %v295
    %v297 = vperm.slane %v273, %v296
    %v298 = vrot.slane %v297, 4
    %v299 = vsel %vm191, 0, %v298
    %v301 = vunpack.c.l.s4 1934713408
    %v302 = vunpack.c.0.s8 %v301
    %v303 = vperm.slane %v297, %v302
    %v305 = vunpack.c.l.s4 1934713408
    %v306 = vunpack.c.0.s8 %v305
    %v307 = vperm.slane %v299, %v306
    %v308 = vrot.slane %v303, 4
    %v309 = vsel %vm191, 0, %v308
    %v310 = vrot.slane %v307, 4
    %v311 = vsel %vm191, 0, %v310
    %v312 = vsel %vm191, %v291, %v284
    %v314 = vunpack.c.l.s4 1983009808
    %v315 = vunpack.c.0.s8 %v314
    %v316 = vperm.slane %v312, %v315
    %v317 = vrot.slane %v292, 4
    %v318 = vsel %vm191, %v317, %v290
    %v320 = vunpack.c.l.s4 1983009808
    %v321 = vunpack.c.0.s8 %v320
    %v322 = vperm.slane %v318, %v321
    %v323 = vrot.slane %v322, 4
    %v324 = vsel %vm191, %v323, %v316
    %v326 = vunpack.c.l.s4 1934713408
    %v327 = vunpack.c.0.s8 %v326
    %v328 = vperm.slane %v324, %v327
    %v329 = vsel %vm191, %v310, %v303
    %v331 = vunpack.c.l.s4 1983009808
    %v332 = vunpack.c.0.s8 %v331
    %v333 = vperm.slane %v329, %v332
    %v334 = vrot.slane %v311, 4
    %v335 = vsel %vm191, %v334, %v309
    %v337 = vunpack.c.l.s4 1983009808
    %v338 = vunpack.c.0.s8 %v337
    %v339 = vperm.slane %v335, %v338
    %v340 = vrot.slane %v339, 4
    %v341 = vsel %vm191, %v340, %v333
    %v343 = vunpack.c.l.s4 1934713408
    %v344 = vunpack.c.0.s8 %v343
    %v345 = vperm.slane %v341, %v344
    %v348 = vpack.i.b16 %v345, %v328
    %v349 = vshrl.u32 %v328, 16
    %v350 = vshrl.u32 %v345, 16
    %v351 = vpack.i.b16 %v350, %v349
    %352 = vrot.lane.b32.xlu0 %v175, 64
    %v353 = vpop.permute.xlu0 %352
    %354 = vrot.lane.b32.xlu0 %v178, 64
    %v355 = vpop.permute.xlu0 %354
    %v358 = vpack.i.b16 %v355, %v353
    %v359 = vshrl.u32 %v353, 16
    %v360 = vshrl.u32 %v355, 16
    %v361 = vpack.i.b16 %v360, %v359
    %v364 = vunpack.c.l.s4 1983009808
    %v365 = vunpack.c.0.s8 %v364
    %v366 = vperm.slane %v358, %v365
    %v367 = vrot.slane %v366, 4
    %v368 = vsel %vm191, 0, %v367
    %v370 = vunpack.c.l.s4 1934713408
    %v371 = vunpack.c.0.s8 %v370
    %v372 = vperm.slane %v366, %v371
    %v374 = vunpack.c.l.s4 1934713408
    %v375 = vunpack.c.0.s8 %v374
    %v376 = vperm.slane %v368, %v375
    %v377 = vrot.slane %v372, 4
    %v378 = vsel %vm191, 0, %v377
    %v379 = vrot.slane %v376, 4
    %v380 = vsel %vm191, 0, %v379
    %v383 = vunpack.c.l.s4 1983009808
    %v384 = vunpack.c.0.s8 %v383
    %v385 = vperm.slane %v361, %v384
    %v386 = vrot.slane %v385, 4
    %v387 = vsel %vm191, 0, %v386
    %v389 = vunpack.c.l.s4 1934713408
    %v390 = vunpack.c.0.s8 %v389
    %v391 = vperm.slane %v385, %v390
    %v393 = vunpack.c.l.s4 1934713408
    %v394 = vunpack.c.0.s8 %v393
    %v395 = vperm.slane %v387, %v394
    %v396 = vrot.slane %v391, 4
    %v397 = vsel %vm191, 0, %v396
    %v398 = vrot.slane %v395, 4
    %v399 = vsel %vm191, 0, %v398
    %v400 = vsel %vm191, %v379, %v372
    %v402 = vunpack.c.l.s4 1983009808
    %v403 = vunpack.c.0.s8 %v402
    %v404 = vperm.slane %v400, %v403
    %v405 = vrot.slane %v380, 4
    %v406 = vsel %vm191, %v405, %v378
    %v408 = vunpack.c.l.s4 1983009808
    %v409 = vunpack.c.0.s8 %v408
    %v410 = vperm.slane %v406, %v409
    %v411 = vrot.slane %v410, 4
    %v412 = vsel %vm191, %v411, %v404
    %v414 = vunpack.c.l.s4 1934713408
    %v415 = vunpack.c.0.s8 %v414
    %v416 = vperm.slane %v412, %v415
    %v417 = vsel %vm191, %v398, %v391
    %v419 = vunpack.c.l.s4 1983009808
    %v420 = vunpack.c.0.s8 %v419
    %v421 = vperm.slane %v417, %v420
    %v422 = vrot.slane %v399, 4
    %v423 = vsel %vm191, %v422, %v397
    %v425 = vunpack.c.l.s4 1983009808
    %v426 = vunpack.c.0.s8 %v425
    %v427 = vperm.slane %v423, %v426
    %v428 = vrot.slane %v427, 4
    %v429 = vsel %vm191, %v428, %v421
    %v431 = vunpack.c.l.s4 1934713408
    %v432 = vunpack.c.0.s8 %v431
    %v433 = vperm.slane %v429, %v432
    %v436 = vpack.i.b16 %v433, %v416
    %v437 = vshrl.u32 %v416, 16
    %v438 = vshrl.u32 %v433, 16
    %v439 = vpack.i.b16 %v438, %v437
    %vm440 = vcmask 130048
    %v442 = vsel %vm440, %v260, 0
    %v445 = vsel %vm440, %v348, 0
    %447 = vmatpush.bf16.xpose.msra.mxu0 0
    %448 = vmatpush.bf16.xpose.msra.mxu0 0
    %449 = vmatpush.bf16.xpose.msra.mxu0 0
    %450 = vmatpush.bf16.xpose.msra.mxu0 0
    %451 = vmatpush.bf16.xpose.msra.mxu0 0
    %452 = vmatpush.bf16.xpose.msra.mxu0 0
    %453 = vmatpush.bf16.xpose.msra.mxu0 0
    %454 = vmatpush.bf16.xpose.msra.mxu0 %v445
    %455 = vmatmul.bf16.gmra.mxu0 %v442
    %v456 = vpop.f32.mrf.mxu0
    %v457 = vadd.f32 0.0, %v456
    %v458 = vpop.f32.mrf.mxu0
    %459 = vdwg.mxu0
    %v461 = vsel %vm440, %v263, 0
    %v464 = vsel %vm440, %v351, 0
    %466 = vmatpush.bf16.xpose.msra.mxu0 0
    %467 = vmatpush.bf16.xpose.msra.mxu0 0
    %468 = vmatpush.bf16.xpose.msra.mxu0 0
    %469 = vmatpush.bf16.xpose.msra.mxu0 0
    %470 = vmatpush.bf16.xpose.msra.mxu0 0
    %471 = vmatpush.bf16.xpose.msra.mxu0 0
    %472 = vmatpush.bf16.xpose.msra.mxu0 0
    %473 = vmatpush.bf16.xpose.msra.mxu0 %v464
    %474 = vmatmul.bf16.gmra.mxu0 %v461
    %v475 = vpop.f32.mrf.mxu0
    %v476 = vadd.f32 0.0, %v475
    %v477 = vpop.f32.mrf.mxu0
    %478 = vdwg.mxu0
    %v479 = vmul.f32 %v457, 0.25
    %v480 = vmul.f32 %v476, 0.25
    %v481 = vadd.f32 %v479, %v135
    %v482 = vadd.f32 %v480, %v135
    %vm483 = vcmask 64512
    %v484 = vsel %vm483, %v481, -inf
    %485 = vmax.xlane.f32.xlu0 %v484
    %v486 = vpop.xlane.xlu0 %485
    %v487 = vsel %vm483, %v482, -inf
    %488 = vmax.xlane.f32.xlu0 %v487
    %v489 = vpop.xlane.xlu0 %488
    %v490 = vsub.f32 %v481, %v486
    %v491 = vsub.f32 %v482, %v489
    %v492 = vmul.f32 %v490, 1.442695
    %v493 = vpow.pop %v492
    %v494 = vmul.f32 %v491, 1.442695
    %v495 = vpow.pop %v494
    %v496 = vsel %vm483, %v493, 0.0
    %497 = vadd.xlane.f32.xlu0 %v496
    %v498 = vpop.xlane.xlu0 %497
    %v499 = vsel %vm483, %v495, 0.0
    %500 = vadd.xlane.f32.xlu0 %v499
    %v501 = vpop.xlane.xlu0 %500
    %v502 = vpack.c.bf16 %v493, %v493
    %v503 = vpack.c.bf16 %v495, %v495
    %v505 = vsel %vm483, %v502, 0
    %vm507 = vcmask 1043456
    %v509 = vsel %vm507, %v436, 0
    %511 = vmatpush.bf16.msra.mxu0 0
    %512 = vmatpush.bf16.msra.mxu0 0
    %513 = vmatpush.bf16.msra.mxu0 0
    %514 = vmatpush.bf16.msra.mxu0 0
    %515 = vmatpush.bf16.msra.mxu0 0
    %516 = vmatpush.bf16.msra.mxu0 0
    %517 = vmatpush.bf16.msra.mxu0 0
    %518 = vmatpush.bf16.msra.mxu0 %v509
    %519 = vmatmul.bf16.gmra.mxu0 %v505
    %v520 = vpop.f32.mrf.mxu0
    %v521 = vadd.f32 0.0, %v520
    %v522 = vpop.f32.mrf.mxu0
    %523 = vdwg.mxu0
    %v525 = vsel %vm483, %v503, 0
    %v528 = vsel %vm507, %v439, 0
    %530 = vmatpush.bf16.msra.mxu0 0
    %531 = vmatpush.bf16.msra.mxu0 0
    %532 = vmatpush.bf16.msra.mxu0 0
    %533 = vmatpush.bf16.msra.mxu0 0
    %534 = vmatpush.bf16.msra.mxu0 0
    %535 = vmatpush.bf16.msra.mxu0 0
    %536 = vmatpush.bf16.msra.mxu0 0
    %537 = vmatpush.bf16.msra.mxu0 %v528
    %538 = vmatmul.bf16.gmra.mxu0 %v525
    %v539 = vpop.f32.mrf.mxu0
    %v540 = vadd.f32 0.0, %v539
    %v541 = vpop.f32.mrf.mxu0
    %542 = vdwg.mxu0
    %vm543 = vcmp.gt.f32.partialorder %v486, -1e+29
    %vm544 = vcmp.gt.f32.partialorder %v489, -1e+29
    %v545 = vrcp.pop %v498
    %v546 = vrcp.pop %v501
    %v547 = vsel %vm543, %v545, 0.0
    %v548 = vsel %vm544, %v546, 0.0
    %v549 = vmul.f32 %v521, %v547
    %v550 = vmul.f32 %v540, %v548
    %v551 = vrot.slane %v549, 4
    %vm552 = vcmask 1047556
    %v553 = vsel %vm552, 0.0, %v551
    %v555 = vunpack.c.l.s4 1983009808
    %v556 = vunpack.c.0.s8 %v555
    %v557 = vperm.slane %v549, %v556
    %v559 = vunpack.c.l.s4 1983009808
    %v560 = vunpack.c.0.s8 %v559
    %v561 = vperm.slane %v553, %v560
    %v562 = vrot.slane %v550, 4
    %v563 = vsel %vm552, 0.0, %v562
    %v565 = vunpack.c.l.s4 1983009808
    %v566 = vunpack.c.0.s8 %v565
    %v567 = vperm.slane %v550, %v566
    %v569 = vunpack.c.l.s4 1983009808
    %v570 = vunpack.c.0.s8 %v569
    %v571 = vperm.slane %v563, %v570
    %v572 = vrot.slane %v567, 4
    %v573 = vsel %vm552, %v572, %v557
    %v574 = vrot.slane %v557, 4
    %v575 = vsel %vm552, %v567, %v574
    %v577 = vunpack.c.l.s4 1934713408
    %v578 = vunpack.c.0.s8 %v577
    %v579 = vperm.slane %v573, %v578
    %v581 = vunpack.c.l.s4 1934713408
    %v582 = vunpack.c.0.s8 %v581
    %v583 = vperm.slane %v575, %v582
    %v584 = vrot.slane %v571, 4
    %v585 = vsel %vm552, %v584, %v561
    %v586 = vrot.slane %v561, 4
    %v587 = vsel %vm552, %v571, %v586
    %v589 = vunpack.c.l.s4 1934713408
    %v590 = vunpack.c.0.s8 %v589
    %v591 = vperm.slane %v585, %v590
    %v593 = vunpack.c.l.s4 1934713408
    %v594 = vunpack.c.0.s8 %v593
    %v595 = vperm.slane %v587, %v594
    %v596 = vrot.slane %v579, 4
    %v597 = vsel %vm552, 0.0, %v596
    %v598 = vrot.slane %v583, 4
    %v599 = vsel %vm552, 0.0, %v598
    %v600 = vrot.slane %v591, 4
    %v601 = vsel %vm552, 0.0, %v600
    %v602 = vrot.slane %v595, 4
    %v603 = vsel %vm552, 0.0, %v602
    %v604 = vsel %vm552, %v598, %v579
    %v606 = vunpack.c.l.s4 1983009808
    %v607 = vunpack.c.0.s8 %v606
    %v608 = vperm.slane %v604, %v607
    %v609 = vrot.slane %v599, 4
    %v610 = vsel %vm552, %v609, %v597
    %v612 = vunpack.c.l.s4 1983009808
    %v613 = vunpack.c.0.s8 %v612
    %v614 = vperm.slane %v610, %v613
    %v615 = vsel %vm552, %v602, %v591
    %v617 = vunpack.c.l.s4 1983009808
    %v618 = vunpack.c.0.s8 %v617
    %v619 = vperm.slane %v615, %v618
    %v620 = vrot.slane %v603, 4
    %v621 = vsel %vm552, %v620, %v601
    %v623 = vunpack.c.l.s4 1983009808
    %v624 = vunpack.c.0.s8 %v623
    %v625 = vperm.slane %v621, %v624
    %v626 = vrot.slane %v614, 4
    %v627 = vsel %vm552, %v626, %v608
    %v629 = vunpack.c.l.s4 1934713408
    %v630 = vunpack.c.0.s8 %v629
    %v631 = vperm.slane %v627, %v630
    %v632 = vrot.slane %v625, 4
    %v633 = vsel %vm552, %v632, %v619
    %v635 = vunpack.c.l.s4 1934713408
    %v636 = vunpack.c.0.s8 %v635
    %v637 = vperm.slane %v633, %v636
    %v638 = vrot.slane %v637, 4
    %v639 = vsel %vm552, %v638, %v631
    %v640 = vrot.slane %v631, 4
    %v641 = vsel %vm552, %v637, %v640
    %643 = vrot.lane.b32.xlu0 %v641, 16
    %v644 = vpop.permute.xlu0 %643
    %v646 = vsel %vm440, %v639, %v644
    %648 = vrot.lane.b32.xlu0 %v172, 32
    %v649 = vpop.permute.xlu0 %648
    %v651 = vadd.f32 %v646, %v649
    %v652 = vmax.f32 %v651, 0.0
    %v653 = vpack.c.bf16 %v652, %v652
    %v654 = vld [vmem:[#allocation10] sm:$0xf]
    %v655 = vld [vmem:[#allocation10 + $0x4] sm:$0xf]
    %v656 = vld [vmem:[#allocation10 + $0x8] sm:$0xf]
    %v657 = vld [vmem:[#allocation10 + $0xc] sm:$0xf]
    %v658 = vld [vmem:[%s7] sm:$0x1]
    %v660 = vperm.slane %v658, 0
    %v666 = vunpack.c.l.b16 %v654
    %v667 = vunpack.c.l.b16 %v655
    %v668 = vunpack.c.l.b16 %v656
    %v669 = vunpack.c.l.b16 %v657
    %v670 = vpack.c.b16 %v667, %v666
    %v671 = vpack.c.b16 %v669, %v668
    %v675 = vsel %vm158, %v653, 0
    %677 = vmatpush.bf16.msra.mxu0 0
    %678 = vmatpush.bf16.msra.mxu0 0
    %679 = vmatpush.bf16.msra.mxu0 0
    %680 = vmatpush.bf16.msra.mxu0 0
    %681 = vmatpush.bf16.msra.mxu0 0
    %682 = vmatpush.bf16.msra.mxu0 0
    %683 = vmatpush.bf16.msra.mxu0 %v671
    %684 = vmatpush.bf16.msra.mxu0 %v670
    %685 = vmatmul.bf16.gmra.mxu0 %v675
    %v686 = vpop.f32.mrf.mxu0
    %v687 = vadd.f32 %v660, %v686
    %v688 = vpop.f32.mrf.mxu0
    %689 = vdwg.mxu0
    %v690 = vpack.c.bf16 %v687, %v687
    %692 = vrot.lane.b32.xlu0 %v690, 112
    %v693 = vpop.permute.xlu0 %692
    %v696 = vpack.i.b16 %v693, %v690
    %v697 = vshrl.u32 %v690, 16
    %v698 = vshrl.u32 %v693, 16
    %v699 = vpack.i.b16 %v698, %v697
    %v702 = vunpack.c.l.s4 1983009808
    %v703 = vunpack.c.0.s8 %v702
    %v704 = vperm.slane %v696, %v703
    %v705 = vrot.slane %v704, 4
    %v706 = vsel %vm191, 0, %v705
    %v708 = vunpack.c.l.s4 1934713408
    %v709 = vunpack.c.0.s8 %v708
    %v710 = vperm.slane %v704, %v709
    %v712 = vunpack.c.l.s4 1934713408
    %v713 = vunpack.c.0.s8 %v712
    %v714 = vperm.slane %v706, %v713
    %v715 = vrot.slane %v710, 4
    %v716 = vsel %vm191, 0, %v715
    %v717 = vrot.slane %v714, 4
    %v718 = vsel %vm191, 0, %v717
    %v721 = vunpack.c.l.s4 1983009808
    %v722 = vunpack.c.0.s8 %v721
    %v723 = vperm.slane %v699, %v722
    %v724 = vrot.slane %v723, 4
    %v725 = vsel %vm191, 0, %v724
    %v727 = vunpack.c.l.s4 1934713408
    %v728 = vunpack.c.0.s8 %v727
    %v729 = vperm.slane %v723, %v728
    %v731 = vunpack.c.l.s4 1934713408
    %v732 = vunpack.c.0.s8 %v731
    %v733 = vperm.slane %v725, %v732
    %v734 = vrot.slane %v729, 4
    %v735 = vsel %vm191, 0, %v734
    %v736 = vrot.slane %v733, 4
    %v737 = vsel %vm191, 0, %v736
    %v738 = vsel %vm191, %v717, %v710
    %v740 = vunpack.c.l.s4 1983009808
    %v741 = vunpack.c.0.s8 %v740
    %v742 = vperm.slane %v738, %v741
    %v743 = vrot.slane %v718, 4
    %v744 = vsel %vm191, %v743, %v716
    %v746 = vunpack.c.l.s4 1983009808
    %v747 = vunpack.c.0.s8 %v746
    %v748 = vperm.slane %v744, %v747
    %v749 = vrot.slane %v748, 4
    %v750 = vsel %vm191, %v749, %v742
    %v752 = vunpack.c.l.s4 1934713408
    %v753 = vunpack.c.0.s8 %v752
    %v754 = vperm.slane %v750, %v753
    %v755 = vsel %vm191, %v736, %v729
    %v757 = vunpack.c.l.s4 1983009808
    %v758 = vunpack.c.0.s8 %v757
    %v759 = vperm.slane %v755, %v758
    %v760 = vrot.slane %v737, 4
    %v761 = vsel %vm191, %v760, %v735
    %v763 = vunpack.c.l.s4 1983009808
    %v764 = vunpack.c.0.s8 %v763
    %v765 = vperm.slane %v761, %v764
    %v766 = vrot.slane %v765, 4
    %v767 = vsel %vm191, %v766, %v759
    %v769 = vunpack.c.l.s4 1934713408
    %v770 = vunpack.c.0.s8 %v769
    %v771 = vperm.slane %v767, %v770
    %v774 = vpack.i.b16 %v771, %v754
    %v775 = vshrl.u32 %v754, 16
    %v776 = vshrl.u32 %v771, 16
    %v777 = vpack.i.b16 %v776, %v775
    %778 = vrot.lane.b32.xlu0 %v690, 96
    %v779 = vpop.permute.xlu0 %778
    %780 = vrot.lane.b32.xlu0 %v693, 96
    %v781 = vpop.permute.xlu0 %780
    %v784 = vpack.i.b16 %v781, %v779
    %v785 = vshrl.u32 %v779, 16
    %v786 = vshrl.u32 %v781, 16
    %v787 = vpack.i.b16 %v786, %v785
    %v790 = vunpack.c.l.s4 1983009808
    %v791 = vunpack.c.0.s8 %v790
    %v792 = vperm.slane %v784, %v791
    %v793 = vrot.slane %v792, 4
    %v794 = vsel %vm191, 0, %v793
    %v796 = vunpack.c.l.s4 1934713408
    %v797 = vunpack.c.0.s8 %v796
    %v798 = vperm.slane %v792, %v797
    %v800 = vunpack.c.l.s4 1934713408
    %v801 = vunpack.c.0.s8 %v800
    %v802 = vperm.slane %v794, %v801
    %v803 = vrot.slane %v798, 4
    %v804 = vsel %vm191, 0, %v803
    %v805 = vrot.slane %v802, 4
    %v806 = vsel %vm191, 0, %v805
    %v809 = vunpack.c.l.s4 1983009808
    %v810 = vunpack.c.0.s8 %v809
    %v811 = vperm.slane %v787, %v810
    %v812 = vrot.slane %v811, 4
    %v813 = vsel %vm191, 0, %v812
    %v815 = vunpack.c.l.s4 1934713408
    %v816 = vunpack.c.0.s8 %v815
    %v817 = vperm.slane %v811, %v816
    %v819 = vunpack.c.l.s4 1934713408
    %v820 = vunpack.c.0.s8 %v819
    %v821 = vperm.slane %v813, %v820
    %v822 = vrot.slane %v817, 4
    %v823 = vsel %vm191, 0, %v822
    %v824 = vrot.slane %v821, 4
    %v825 = vsel %vm191, 0, %v824
    %v826 = vsel %vm191, %v805, %v798
    %v828 = vunpack.c.l.s4 1983009808
    %v829 = vunpack.c.0.s8 %v828
    %v830 = vperm.slane %v826, %v829
    %v831 = vrot.slane %v806, 4
    %v832 = vsel %vm191, %v831, %v804
    %v834 = vunpack.c.l.s4 1983009808
    %v835 = vunpack.c.0.s8 %v834
    %v836 = vperm.slane %v832, %v835
    %v837 = vrot.slane %v836, 4
    %v838 = vsel %vm191, %v837, %v830
    %v840 = vunpack.c.l.s4 1934713408
    %v841 = vunpack.c.0.s8 %v840
    %v842 = vperm.slane %v838, %v841
    %v843 = vsel %vm191, %v824, %v817
    %v845 = vunpack.c.l.s4 1983009808
    %v846 = vunpack.c.0.s8 %v845
    %v847 = vperm.slane %v843, %v846
    %v848 = vrot.slane %v825, 4
    %v849 = vsel %vm191, %v848, %v823
    %v851 = vunpack.c.l.s4 1983009808
    %v852 = vunpack.c.0.s8 %v851
    %v853 = vperm.slane %v849, %v852
    %v854 = vrot.slane %v853, 4
    %v855 = vsel %vm191, %v854, %v847
    %v857 = vunpack.c.l.s4 1934713408
    %v858 = vunpack.c.0.s8 %v857
    %v859 = vperm.slane %v855, %v858
    %v862 = vpack.i.b16 %v859, %v842
    %v863 = vshrl.u32 %v842, 16
    %v864 = vshrl.u32 %v859, 16
    %v865 = vpack.i.b16 %v864, %v863
    %866 = vrot.lane.b32.xlu0 %v690, 64
    %v867 = vpop.permute.xlu0 %866
    %868 = vrot.lane.b32.xlu0 %v693, 64
    %v869 = vpop.permute.xlu0 %868
    %v872 = vpack.i.b16 %v869, %v867
    %v873 = vshrl.u32 %v867, 16
    %v874 = vshrl.u32 %v869, 16
    %v875 = vpack.i.b16 %v874, %v873
    %v878 = vunpack.c.l.s4 1983009808
    %v879 = vunpack.c.0.s8 %v878
    %v880 = vperm.slane %v872, %v879
    %v881 = vrot.slane %v880, 4
    %v882 = vsel %vm191, 0, %v881
    %v884 = vunpack.c.l.s4 1934713408
    %v885 = vunpack.c.0.s8 %v884
    %v886 = vperm.slane %v880, %v885
    %v888 = vunpack.c.l.s4 1934713408
    %v889 = vunpack.c.0.s8 %v888
    %v890 = vperm.slane %v882, %v889
    %v891 = vrot.slane %v886, 4
    %v892 = vsel %vm191, 0, %v891
    %v893 = vrot.slane %v890, 4
    %v894 = vsel %vm191, 0, %v893
    %v897 = vunpack.c.l.s4 1983009808
    %v898 = vunpack.c.0.s8 %v897
    %v899 = vperm.slane %v875, %v898
    %v900 = vrot.slane %v899, 4
    %v901 = vsel %vm191, 0, %v900
    %v903 = vunpack.c.l.s4 1934713408
    %v904 = vunpack.c.0.s8 %v903
    %v905 = vperm.slane %v899, %v904
    %v907 = vunpack.c.l.s4 1934713408
    %v908 = vunpack.c.0.s8 %v907
    %v909 = vperm.slane %v901, %v908
    %v910 = vrot.slane %v905, 4
    %v911 = vsel %vm191, 0, %v910
    %v912 = vrot.slane %v909, 4
    %v913 = vsel %vm191, 0, %v912
    %v914 = vsel %vm191, %v893, %v886
    %v916 = vunpack.c.l.s4 1983009808
    %v917 = vunpack.c.0.s8 %v916
    %v918 = vperm.slane %v914, %v917
    %v919 = vrot.slane %v894, 4
    %v920 = vsel %vm191, %v919, %v892
    %v922 = vunpack.c.l.s4 1983009808
    %v923 = vunpack.c.0.s8 %v922
    %v924 = vperm.slane %v920, %v923
    %v925 = vrot.slane %v924, 4
    %v926 = vsel %vm191, %v925, %v918
    %v928 = vunpack.c.l.s4 1934713408
    %v929 = vunpack.c.0.s8 %v928
    %v930 = vperm.slane %v926, %v929
    %v931 = vsel %vm191, %v912, %v905
    %v933 = vunpack.c.l.s4 1983009808
    %v934 = vunpack.c.0.s8 %v933
    %v935 = vperm.slane %v931, %v934
    %v936 = vrot.slane %v913, 4
    %v937 = vsel %vm191, %v936, %v911
    %v939 = vunpack.c.l.s4 1983009808
    %v940 = vunpack.c.0.s8 %v939
    %v941 = vperm.slane %v937, %v940
    %v942 = vrot.slane %v941, 4
    %v943 = vsel %vm191, %v942, %v935
    %v945 = vunpack.c.l.s4 1934713408
    %v946 = vunpack.c.0.s8 %v945
    %v947 = vperm.slane %v943, %v946
    %v950 = vpack.i.b16 %v947, %v930
    %v951 = vshrl.u32 %v930, 16
    %v952 = vshrl.u32 %v947, 16
    %v953 = vpack.i.b16 %v952, %v951
    %v955 = vsel %vm440, %v774, 0
    %v958 = vsel %vm440, %v862, 0
    %960 = vmatpush.bf16.xpose.msra.mxu0 0
    %961 = vmatpush.bf16.xpose.msra.mxu0 0
    %962 = vmatpush.bf16.xpose.msra.mxu0 0
    %963 = vmatpush.bf16.xpose.msra.mxu0 0
    %964 = vmatpush.bf16.xpose.msra.mxu0 0
    %965 = vmatpush.bf16.xpose.msra.mxu0 0
    %966 = vmatpush.bf16.xpose.msra.mxu0 0
    %967 = vmatpush.bf16.xpose.msra.mxu0 %v958
    %968 = vmatmul.bf16.gmra.mxu0 %v955
    %v969 = vpop.f32.mrf.mxu0
    %v970 = vadd.f32 0.0, %v969
    %v971 = vpop.f32.mrf.mxu0
    %972 = vdwg.mxu0
    %v974 = vsel %vm440, %v777, 0
    %v977 = vsel %vm440, %v865, 0
    %979 = vmatpush.bf16.xpose.msra.mxu0 0
    %980 = vmatpush.bf16.xpose.msra.mxu0 0
    %981 = vmatpush.bf16.xpose.msra.mxu0 0
    %982 = vmatpush.bf16.xpose.msra.mxu0 0
    %983 = vmatpush.bf16.xpose.msra.mxu0 0
    %984 = vmatpush.bf16.xpose.msra.mxu0 0
    %985 = vmatpush.bf16.xpose.msra.mxu0 0
    %986 = vmatpush.bf16.xpose.msra.mxu0 %v977
    %987 = vmatmul.bf16.gmra.mxu0 %v974
    %v988 = vpop.f32.mrf.mxu0
    %v989 = vadd.f32 0.0, %v988
    %v990 = vpop.f32.mrf.mxu0
    %991 = vdwg.mxu0
    %v992 = vmul.f32 %v970, 0.25
    %v993 = vmul.f32 %v989, 0.25
    %v994 = vadd.f32 %v992, %v135
    %v995 = vadd.f32 %v993, %v135
    %v996 = vsel %vm483, %v994, -inf
    %997 = vmax.xlane.f32.xlu0 %v996
    %v998 = vpop.xlane.xlu0 %997
    %v999 = vsel %vm483, %v995, -inf
    %1000 = vmax.xlane.f32.xlu0 %v999
    %v1001 = vpop.xlane.xlu0 %1000
    %v1002 = vsub.f32 %v994, %v998
    %v1003 = vsub.f32 %v995, %v1001
    %v1004 = vmul.f32 %v1002, 1.442695
    %v1005 = vpow.pop %v1004
    %v1006 = vmul.f32 %v1003, 1.442695
    %v1007 = vpow.pop %v1006
    %v1008 = vsel %vm483, %v1005, 0.0
    %1009 = vadd.xlane.f32.xlu0 %v1008
    %v1010 = vpop.xlane.xlu0 %1009
    %v1011 = vsel %vm483, %v1007, 0.0
    %1012 = vadd.xlane.f32.xlu0 %v1011
    %v1013 = vpop.xlane.xlu0 %1012
    %v1014 = vpack.c.bf16 %v1005, %v1005
    %v1015 = vpack.c.bf16 %v1007, %v1007
    %v1017 = vsel %vm483, %v1014, 0
    %v1020 = vsel %vm507, %v950, 0
    %1022 = vmatpush.bf16.msra.mxu0 0
    %1023 = vmatpush.bf16.msra.mxu0 0
    %1024 = vmatpush.bf16.msra.mxu0 0
    %1025 = vmatpush.bf16.msra.mxu0 0
    %1026 = vmatpush.bf16.msra.mxu0 0
    %1027 = vmatpush.bf16.msra.mxu0 0
    %1028 = vmatpush.bf16.msra.mxu0 0
    %1029 = vmatpush.bf16.msra.mxu0 %v1020
    %1030 = vmatmul.bf16.gmra.mxu0 %v1017
    %v1031 = vpop.f32.mrf.mxu0
    %v1032 = vadd.f32 0.0, %v1031
    %v1033 = vpop.f32.mrf.mxu0
    %1034 = vdwg.mxu0
    %v1036 = vsel %vm483, %v1015, 0
    %v1039 = vsel %vm507, %v953, 0
    %1041 = vmatpush.bf16.msra.mxu0 0
    %1042 = vmatpush.bf16.msra.mxu0 0
    %1043 = vmatpush.bf16.msra.mxu0 0
    %1044 = vmatpush.bf16.msra.mxu0 0
    %1045 = vmatpush.bf16.msra.mxu0 0
    %1046 = vmatpush.bf16.msra.mxu0 0
    %1047 = vmatpush.bf16.msra.mxu0 0
    %1048 = vmatpush.bf16.msra.mxu0 %v1039
    %1049 = vmatmul.bf16.gmra.mxu0 %v1036
    %v1050 = vpop.f32.mrf.mxu0
    %v1051 = vadd.f32 0.0, %v1050
    %v1052 = vpop.f32.mrf.mxu0
    %1053 = vdwg.mxu0
    %vm1054 = vcmp.gt.f32.partialorder %v998, -1e+29
    %vm1055 = vcmp.gt.f32.partialorder %v1001, -1e+29
    %v1056 = vrcp.pop %v1010
    %v1057 = vrcp.pop %v1013
    %v1058 = vsel %vm1054, %v1056, 0.0
    %v1059 = vsel %vm1055, %v1057, 0.0
    %v1060 = vmul.f32 %v1032, %v1058
    %v1061 = vmul.f32 %v1051, %v1059
    %v1062 = vrot.slane %v1060, 4
    %v1063 = vsel %vm552, 0.0, %v1062
    %v1065 = vunpack.c.l.s4 1983009808
    %v1066 = vunpack.c.0.s8 %v1065
    %v1067 = vperm.slane %v1060, %v1066
    %v1069 = vunpack.c.l.s4 1983009808
    %v1070 = vunpack.c.0.s8 %v1069
    %v1071 = vperm.slane %v1063, %v1070
    %v1072 = vrot.slane %v1061, 4
    %v1073 = vsel %vm552, 0.0, %v1072
    %v1075 = vunpack.c.l.s4 1983009808
    %v1076 = vunpack.c.0.s8 %v1075
    %v1077 = vperm.slane %v1061, %v1076
    %v1079 = vunpack.c.l.s4 1983009808
    %v1080 = vunpack.c.0.s8 %v1079
    %v1081 = vperm.slane %v1073, %v1080
    %v1082 = vrot.slane %v1077, 4
    %v1083 = vsel %vm552, %v1082, %v1067
    %v1084 = vrot.slane %v1067, 4
    %v1085 = vsel %vm552, %v1077, %v1084
    %v1087 = vunpack.c.l.s4 1934713408
    %v1088 = vunpack.c.0.s8 %v1087
    %v1089 = vperm.slane %v1083, %v1088
    %v1091 = vunpack.c.l.s4 1934713408
    %v1092 = vunpack.c.0.s8 %v1091
    %v1093 = vperm.slane %v1085, %v1092
    %v1094 = vrot.slane %v1081, 4
    %v1095 = vsel %vm552, %v1094, %v1071
    %v1096 = vrot.slane %v1071, 4
    %v1097 = vsel %vm552, %v1081, %v1096
    %v1099 = vunpack.c.l.s4 1934713408
    %v1100 = vunpack.c.0.s8 %v1099
    %v1101 = vperm.slane %v1095, %v1100
    %v1103 = vunpack.c.l.s4 1934713408
    %v1104 = vunpack.c.0.s8 %v1103
    %v1105 = vperm.slane %v1097, %v1104
    %v1106 = vrot.slane %v1089, 4
    %v1107 = vsel %vm552, 0.0, %v1106
    %v1108 = vrot.slane %v1093, 4
    %v1109 = vsel %vm552, 0.0, %v1108
    %v1110 = vrot.slane %v1101, 4
    %v1111 = vsel %vm552, 0.0, %v1110
    %v1112 = vrot.slane %v1105, 4
    %v1113 = vsel %vm552, 0.0, %v1112
    %v1114 = vsel %vm552, %v1108, %v1089
    %v1116 = vunpack.c.l.s4 1983009808
    %v1117 = vunpack.c.0.s8 %v1116
    %v1118 = vperm.slane %v1114, %v1117
    %v1119 = vrot.slane %v1109, 4
    %v1120 = vsel %vm552, %v1119, %v1107
    %v1122 = vunpack.c.l.s4 1983009808
    %v1123 = vunpack.c.0.s8 %v1122
    %v1124 = vperm.slane %v1120, %v1123
    %v1125 = vsel %vm552, %v1112, %v1101
    %v1127 = vunpack.c.l.s4 1983009808
    %v1128 = vunpack.c.0.s8 %v1127
    %v1129 = vperm.slane %v1125, %v1128
    %v1130 = vrot.slane %v1113, 4
    %v1131 = vsel %vm552, %v1130, %v1111
    %v1133 = vunpack.c.l.s4 1983009808
    %v1134 = vunpack.c.0.s8 %v1133
    %v1135 = vperm.slane %v1131, %v1134
    %v1136 = vrot.slane %v1124, 4
    %v1137 = vsel %vm552, %v1136, %v1118
    %v1139 = vunpack.c.l.s4 1934713408
    %v1140 = vunpack.c.0.s8 %v1139
    %v1141 = vperm.slane %v1137, %v1140
    %v1142 = vrot.slane %v1135, 4
    %v1143 = vsel %vm552, %v1142, %v1129
    %v1145 = vunpack.c.l.s4 1934713408
    %v1146 = vunpack.c.0.s8 %v1145
    %v1147 = vperm.slane %v1143, %v1146
    %v1148 = vrot.slane %v1147, 4
    %v1149 = vsel %vm552, %v1148, %v1141
    %v1150 = vrot.slane %v1141, 4
    %v1151 = vsel %vm552, %v1147, %v1150
    %1153 = vrot.lane.b32.xlu0 %v1151, 16
    %v1154 = vpop.permute.xlu0 %1153
    %v1156 = vsel %vm440, %v1149, %v1154
    %1158 = vrot.lane.b32.xlu0 %v687, 32
    %v1159 = vpop.permute.xlu0 %1158
    %v1161 = vadd.f32 %v1156, %v1159
    %v1162 = vmax.f32 %v1161, 0.0
    %1163 = vst.msk [vmem:[#allocation2] sm:$0xff] %vm158, %v1162
    %s1164 = sld [smem:[#allocation9]]
    %s1165 = scalar_lea.vmem [#allocation2], %s1164
    %v1166 = vld [vmem:[%s1165] sm:$0x1]
    %vm1167 = vcmask 253952
    %1168 = vst.msk [vmem:[#allocation3] sm:$0x1] %vm1167, %v1166
    %s1169 = sld [smem:[#allocation9 + $0x1]]
    %s1170 = scalar_lea.vmem [#allocation2], %s1169
    %v1171 = vld [vmem:[%s1170] sm:$0x1]
    %1172 = vst.msk [vmem:[#allocation3 + $0x1] sm:$0x1] %vm1167, %v1171
    %s1173 = sld [smem:[#allocation9 + $0x2]]
    %s1174 = scalar_lea.vmem [#allocation2], %s1173
    %v1175 = vld [vmem:[%s1174] sm:$0x1]
    %1176 = vst.msk [vmem:[#allocation3 + $0x2] sm:$0x1] %vm1167, %v1175
    %s1177 = sld [smem:[#allocation9 + $0x3]]
    %s1178 = scalar_lea.vmem [#allocation2], %s1177
    %v1179 = vld [vmem:[%s1178] sm:$0x1]
    %1180 = vst.msk [vmem:[#allocation3 + $0x3] sm:$0x1] %vm1167, %v1179
    %s1181 = sld [smem:[#allocation9 + $0x4]]
    %s1182 = scalar_lea.vmem [#allocation2], %s1181
    %v1183 = vld [vmem:[%s1182] sm:$0x1]
    %1184 = vst.msk [vmem:[#allocation3 + $0x4] sm:$0x1] %vm1167, %v1183
    %s1185 = sld [smem:[#allocation9 + $0x5]]
    %s1186 = scalar_lea.vmem [#allocation2], %s1185
    %v1187 = vld [vmem:[%s1186] sm:$0x1]
    %1188 = vst.msk [vmem:[#allocation3 + $0x5] sm:$0x1] %vm1167, %v1187
    %s1189 = sld [smem:[#allocation9 + $0x6]]
    %s1190 = scalar_lea.vmem [#allocation2], %s1189
    %v1191 = vld [vmem:[%s1190] sm:$0x1]
    %1192 = vst.msk [vmem:[#allocation3 + $0x6] sm:$0x1] %vm1167, %v1191
    %s1193 = sld [smem:[#allocation9 + $0x7]]
    %s1194 = scalar_lea.vmem [#allocation2], %s1193
    %v1195 = vld [vmem:[%s1194] sm:$0x1]
    %1196 = vst.msk [vmem:[#allocation3 + $0x7] sm:$0x1] %vm1167, %v1195
    %s1197 = sld [smem:[#allocation9 + $0x8]]
    %s1198 = scalar_lea.vmem [#allocation2], %s1197
    %v1199 = vld [vmem:[%s1198] sm:$0x1]
    %1200 = vst.msk [vmem:[#allocation3 + $0x8] sm:$0x1] %vm1167, %v1199
    %s1201 = sld [smem:[#allocation9 + $0x9]]
    %s1202 = scalar_lea.vmem [#allocation2], %s1201
    %v1203 = vld [vmem:[%s1202] sm:$0x1]
    %1204 = vst.msk [vmem:[#allocation3 + $0x9] sm:$0x1] %vm1167, %v1203
    %v1205 = vld [vmem:[#allocation3] sm:$0xff]
    %v1206 = vld [vmem:[#allocation3 + $0x8] sm:$0x3]
    %v1209 = vrot.slane %v1205, 1
    %v1210 = vrot.slane %v1205, 2
    %v1211 = vrot.slane %v1205, 3
    %v1212 = vrot.slane %v1205, 4
    %v1213 = vrot.slane %v1205, 5
    %v1214 = vrot.slane %v1205, 6
    %v1215 = vrot.slane %v1205, 7
    %v1216 = vrot.slane %v1206, 1
    %v1217 = vpack.c.bf16 %v1206, %v1205
    %v1218 = vld [vmem:[#allocation12] sm:$0xf]
    %v1219 = vld [vmem:[#allocation12 + $0x4] sm:$0xf]
    %v1220 = vld [vmem:[#allocation12 + $0x8] sm:$0xf]
    %v1221 = vld [vmem:[#allocation12 + $0xc] sm:$0xf]
    %v1226 = vunpack.c.l.b16 %v1218
    %v1227 = vunpack.c.l.b16 %v1219
    %v1228 = vunpack.c.l.b16 %v1220
    %v1229 = vunpack.c.l.b16 %v1221
    %v1230 = vpack.c.b16 %v1227, %v1226
    %v1231 = vpack.c.b16 %v1229, %v1228
    %v1235 = vsel %vm158, %v1217, 0
    %1237 = vmatpush.bf16.msra.mxu0 0
    %1238 = vmatpush.bf16.msra.mxu0 0
    %1239 = vmatpush.bf16.msra.mxu0 0
    %1240 = vmatpush.bf16.msra.mxu0 0
    %1241 = vmatpush.bf16.msra.mxu0 0
    %1242 = vmatpush.bf16.msra.mxu0 0
    %1243 = vmatpush.bf16.msra.mxu0 %v1231
    %1244 = vmatpush.bf16.msra.mxu0 %v1230
    %1245 = vmatmul.bf16.gmra.mxu0 %v1235
    %v1246 = vpop.f32.mrf.mxu0
    %v1247 = vadd.f32 0.0, %v1246
    %v1248 = vpop.f32.mrf.mxu0
    %v1249 = vadd.f32 0.0, %v1248
    %1250 = vdwg.mxu0
    %v1253 = vrot.slane %v1247, 1
    %v1254 = vrot.slane %v1247, 2
    %v1255 = vrot.slane %v1247, 3
    %v1256 = vrot.slane %v1247, 4
    %v1257 = vrot.slane %v1247, 5
    %v1258 = vrot.slane %v1247, 6
    %v1259 = vrot.slane %v1247, 7
    %v1260 = vrot.slane %v1249, 1
    %v1261 = vperm.slane %v1247, 0
    %v1262 = vperm.slane %v1257, 0
    %1265 = vst [vmem:[#allocation1] ss:$9 sm:$0xff] %v1247
    %s1266 = scalar_lea.vmem [#allocation1], 1
    %1267 = vst [vmem:[%s1266] ss:$9 sm:$0xff] %v1253
    %s1268 = scalar_lea.vmem [#allocation1], 2
    %1269 = vst [vmem:[%s1268] ss:$9 sm:$0xff] %v1254
    %s1270 = scalar_lea.vmem [#allocation1], 3
    %1271 = vst [vmem:[%s1270] ss:$9 sm:$0xff] %v1255
    %s1272 = scalar_lea.vmem [#allocation1], 4
    %1273 = vst [vmem:[%s1272] ss:$9 sm:$0xff] %v1256
    %v1274 = vld [vmem:[#allocation1] sm:$0xff]
    %1275 = vst [vmem:[#allocation1] ss:$9 sm:$0xff] %v1257
    %1276 = vst [vmem:[%s1266] ss:$9 sm:$0xff] %v1258
    %1277 = vst [vmem:[%s1268] ss:$9 sm:$0xff] %v1259
    %1278 = vst [vmem:[%s1270] ss:$9 sm:$0xff] %v1249
    %1279 = vst [vmem:[%s1272] ss:$9 sm:$0xff] %v1260
    %v1280 = vld [vmem:[#allocation1] sm:$0xff]
    %1281 = vrot.lane.b32.xlu0 %v1274, 32
    %v1282 = vpop.permute.xlu0 %1281
    %1283 = vrot.lane.b32.xlu0 %v1280, 32
    %v1284 = vpop.permute.xlu0 %1283
    %v1287 = vadd.f32 %v1261, %v1282
    %v1288 = vadd.f32 %v1262, %v1284
    %v1289 = vld [vmem:[%s9] sm:$0x1]
    %v1291 = vperm.slane %v1289, 0
    %1292 = vrot.lane.b32.xlu0 %v1291, 32
    %v1293 = vpop.permute.xlu0 %1292
    %v1295 = vadd.f32 %v1287, %v1293
    %v1296 = vadd.f32 %v1288, %v1293
    %v1297 = vmax.f32 %v1295, 0.0
    %v1298 = vmax.f32 %v1296, 0.0
    %v1299 = vld [vmem:[%s10] sm:$0x1]
    %v1301 = vperm.slane %v1299, 0
    %1302 = vrot.lane.b32.xlu0 %v1301, 32
    %v1303 = vpop.permute.xlu0 %1302
    %v1305 = vmul.f32 %v1297, %v1303
    %v1306 = vmul.f32 %v1298, %v1303
    %1309 = vrot.lane.b32.xlu0 %v1305, 96
    %v1310 = vpop.permute.xlu0 %1309
    %1311 = vrot.lane.b32.xlu0 %v1306, 96
    %v1312 = vpop.permute.xlu0 %1311
    %vm1315 = vcmask 258048
    %v1316 = vsel %vm1315, %v1310, 0.0
    %1317 = vadd.xlane.f32.xlu0 %v1316
    %v1318 = vpop.xlane.xlu0 %1317
    %v1319 = vsel %vm1315, %v1312, 0.0
    %1320 = vadd.xlane.f32.xlu0 %v1319
    %v1321 = vpop.xlane.xlu0 %1320
    %v1322 = vld [vmem:[#allocation4] sm:$0x1]
    %v1324 = vperm.slane %v1322, 0
    %v1326 = vadd.f32 %v1318, %v1324
    %v1327 = vadd.f32 %v1321, %v1324
    %v1328 = vld [vmem:[%s3] sm:$0x3]
    %v1329 = vperm.slane %v1328, 0
    %v1330 = vlaneseq
    %v1331 = vshrl.u32 %v1330, 7
    %1333 = vset.pattern.permute.xlu0 %v1331
    %1334 = vperm.xlu0 %1333, %v1329
    %v1335 = vpop.permute.xlu0 %1334
    %v1336 = vperm.slane %v1328, 1
    %v1337 = vlaneseq
    %v1338 = vshrl.u32 %v1337, 7
    %1340 = vset.pattern.permute.xlu0 %v1338
    %1341 = vperm.xlu0 %1340, %v1336
    %v1342 = vpop.permute.xlu0 %1341
    %vm1343 = vcmp.gt.f32.partialorder %v1335, 0.0
    %vm1344 = vcmp.gt.f32.partialorder %v1342, 0.0
    %v1345 = vsel %vm1343, 1, 0
    %v1346 = vsel %vm1344, 1, 0
    %vm1347 = vcmp.eq.s32.totalorder %v1345, 1
    %vm1348 = vcmp.eq.s32.totalorder %v1346, 1
    %1349 = vst [vmem:[#allocation1] ss:$9 sm:$0xff] %v1205
    %s1350 = scalar_lea.vmem [#allocation1], 1
    %1351 = vst [vmem:[%s1350] ss:$9 sm:$0xff] %v1209
    %s1352 = scalar_lea.vmem [#allocation1], 2
    %1353 = vst [vmem:[%s1352] ss:$9 sm:$0xff] %v1210
    %s1354 = scalar_lea.vmem [#allocation1], 3
    %1355 = vst [vmem:[%s1354] ss:$9 sm:$0xff] %v1211
    %s1356 = scalar_lea.vmem [#allocation1], 4
    %1357 = vst [vmem:[%s1356] ss:$9 sm:$0xff] %v1212
    %v1358 = vld [vmem:[#allocation1] sm:$0xff]
    %1359 = vst [vmem:[#allocation1] ss:$9 sm:$0xff] %v1213
    %1360 = vst [vmem:[%s1350] ss:$9 sm:$0xff] %v1214
    %1361 = vst [vmem:[%s1352] ss:$9 sm:$0xff] %v1215
    %1362 = vst [vmem:[%s1354] ss:$9 sm:$0xff] %v1206
    %1363 = vst [vmem:[%s1356] ss:$9 sm:$0xff] %v1216
    %v1364 = vld [vmem:[#allocation1] sm:$0xff]
    %v1367 = vsel %vm1347, 0.0, %v1358
    %v1368 = vsel %vm1348, 0.0, %v1364
    %v1369 = vsel %vm1343, -1e+30, %v1326
    %v1370 = vsel %vm1344, -1e+30, %v1327
    %vm1371 = vcmask 4096
    %v1372 = vsel %vm1371, %v1369, -inf
    %v1373 = vrot.slane %v1372, 4
    %v1374 = vmax.f32 %v1372, %v1373
    %v1375 = vrot.slane %v1374, 2
    %v1376 = vmax.f32 %v1374, %v1375
    %v1377 = vrot.slane %v1376, 1
    %v1378 = vmax.f32 %v1376, %v1377
    %v1379 = vsel %vm1371, %v1370, -inf
    %v1380 = vrot.slane %v1379, 4
    %v1381 = vmax.f32 %v1379, %v1380
    %v1382 = vrot.slane %v1381, 2
    %v1383 = vmax.f32 %v1381, %v1382
    %v1384 = vrot.slane %v1383, 1
    %v1385 = vmax.f32 %v1383, %v1384
    %v1386 = vsub.f32 %v1369, %v1378
    %v1387 = vsub.f32 %v1370, %v1385
    %v1388 = vmul.f32 %v1386, 1.442695
    %v1389 = vpow.pop %v1388
    %v1390 = vmul.f32 %v1387, 1.442695
    %v1391 = vpow.pop %v1390
    %v1392 = vsel %vm1371, %v1389, 0.0
    %v1393 = vrot.slane %v1392, 4
    %v1394 = vadd.f32 %v1392, %v1393
    %v1395 = vrot.slane %v1394, 2
    %v1396 = vadd.f32 %v1394, %v1395
    %v1397 = vrot.slane %v1396, 1
    %v1398 = vadd.f32 %v1396, %v1397
    %v1399 = vsel %vm1371, %v1391, 0.0
    %v1400 = vrot.slane %v1399, 4
    %v1401 = vadd.f32 %v1399, %v1400
    %v1402 = vrot.slane %v1401, 2
    %v1403 = vadd.f32 %v1401, %v1402
    %v1404 = vrot.slane %v1403, 1
    %v1405 = vadd.f32 %v1403, %v1404
    %v1406 = vrcp.pop %v1398
    %v1407 = vrcp.pop %v1405
    %v1408 = vmul.f32 %v1389, %v1406
    %v1409 = vmul.f32 %v1391, %v1407
    %1411 = vset.pattern.permute.xlu0 0
    %1412 = vperm.xlu0 %1411, %v1408
    %v1413 = vpop.permute.xlu0 %1412
    %1416 = vset.pattern.permute.xlu0 0
    %1417 = vperm.xlu0 %1416, %v1409
    %v1418 = vpop.permute.xlu0 %1417
    %v1420 = vmul.f32 %v1367, %v1413
    %v1421 = vmul.f32 %v1368, %v1418
    %v1422 = vsel %vm1315, %v1420, 0.0
    %v1423 = vrot.slane %v1422, 4
    %v1424 = vadd.f32 %v1422, %v1423
    %v1425 = vrot.slane %v1424, 2
    %v1426 = vadd.f32 %v1424, %v1425
    %v1427 = vrot.slane %v1426, 1
    %v1428 = vadd.f32 %v1426, %v1427
    %v1429 = vsel %vm1315, %v1421, 0.0
    %v1430 = vrot.slane %v1429, 4
    %v1431 = vadd.f32 %v1429, %v1430
    %v1432 = vrot.slane %v1431, 2
    %v1433 = vadd.f32 %v1431, %v1432
    %v1434 = vrot.slane %v1433, 1
    %v1435 = vadd.f32 %v1433, %v1434
    %v1436 = vpack.c.bf16 %v1428, %v1428
    %v1437 = vpack.c.bf16 %v1435, %v1435
    %v1438 = vld [vmem:[#allocation13] sm:$0xf]
    %v1439 = vld [vmem:[#allocation13 + $0x4] sm:$0xf]
    %v1440 = vld [vmem:[#allocation13 + $0x8] sm:$0xf]
    %v1441 = vld [vmem:[#allocation13 + $0xc] sm:$0xf]
    %v1442 = vld [vmem:[%s13] sm:$0x1]
    %v1444 = vperm.slane %v1442, 0
    %v1448 = vunpack.c.l.b16 %v1436
    %v1449 = vunpack.c.l.b16 %v1437
    %vm1450 = vcmask 1041409
    %v1451 = vsel %vm1450, %v1449, %v1448
    %v1452 = vpack.c.b16 %v1451, %v1451
    %v1457 = vunpack.c.l.b16 %v1438
    %v1458 = vunpack.c.l.b16 %v1439
    %v1459 = vunpack.c.l.b16 %v1440
    %v1460 = vunpack.c.l.b16 %v1441
    %v1461 = vpack.c.b16 %v1458, %v1457
    %v1462 = vpack.c.b16 %v1460, %v1459
    %v1466 = vsel %vm158, %v1452, 0
    %1468 = vmatpush.bf16.msra.mxu0 0
    %1469 = vmatpush.bf16.msra.mxu0 0
    %1470 = vmatpush.bf16.msra.mxu0 0
    %1471 = vmatpush.bf16.msra.mxu0 0
    %1472 = vmatpush.bf16.msra.mxu0 0
    %1473 = vmatpush.bf16.msra.mxu0 0
    %1474 = vmatpush.bf16.msra.mxu0 %v1462
    %1475 = vmatpush.bf16.msra.mxu0 %v1461
    %1476 = vmatmul.bf16.gmra.mxu0 %v1466
    %v1477 = vpop.f32.mrf.mxu0
    %v1478 = vadd.f32 %v1444, %v1477
    %v1479 = vpop.f32.mrf.mxu0
    %1480 = vdwg.mxu0
    %v1481 = vtanh.pop %v1478
    %v1482 = vpack.c.bf16 %v1481, %v1481
    %v1483 = vld [vmem:[%s14] sm:$0xf]
    %v1484 = vld [vmem:[%s14 + $0x4] sm:$0xf]
    %v1485 = vld [vmem:[%s14 + $0x8] sm:$0xf]
    %v1486 = vld [vmem:[%s14 + $0xc] sm:$0xf]
    %v1487 = vld [vmem:[%s15] sm:$0x1]
    %v1489 = vperm.slane %v1487, 0
    %v1495 = vunpack.c.l.b16 %v1483
    %v1496 = vunpack.c.l.b16 %v1484
    %v1497 = vunpack.c.l.b16 %v1485
    %v1498 = vunpack.c.l.b16 %v1486
    %v1499 = vpack.c.b16 %v1496, %v1495
    %v1500 = vpack.c.b16 %v1498, %v1497
    %v1504 = vsel %vm158, %v1482, 0
    %1506 = vmatpush.bf16.msra.mxu0 0
    %1507 = vmatpush.bf16.msra.mxu0 0
    %1508 = vmatpush.bf16.msra.mxu0 0
    %1509 = vmatpush.bf16.msra.mxu0 0
    %1510 = vmatpush.bf16.msra.mxu0 0
    %1511 = vmatpush.bf16.msra.mxu0 0
    %1512 = vmatpush.bf16.msra.mxu0 %v1500
    %1513 = vmatpush.bf16.msra.mxu0 %v1499
    %1514 = vmatmul.bf16.gmra.mxu0 %v1504
    %v1515 = vpop.f32.mrf.mxu0
    %v1516 = vadd.f32 %v1489, %v1515
    %v1517 = vpop.f32.mrf.mxu0
    %1518 = vdwg.mxu0
    %vm1519 = vcmask 17408
    %v1520 = vsel %vm1519, %v1516, -inf
    %1521 = vmax.xlane.f32.xlu0 %v1520
    %v1522 = vpop.xlane.xlu0 %1521
    %v1523 = vsub.f32 %v1516, %v1522
    %v1524 = vmul.f32 %v1523, 1.442695
    %v1525 = vpow.pop %v1524
    %v1526 = vsel %vm1519, %v1525, 0.0
    %1527 = vadd.xlane.f32.xlu0 %v1526
    %v1528 = vpop.xlane.xlu0 %1527
    %v1529 = vlog2.pop %v1528
    %v1530 = vmul.f32 %v1529, 0.6931472
    %v1531 = vadd.f32 %v1530, %v1522
    %v1532 = vsub.f32 %v1516, %v1531
    %1533 = vst.msk [vmem:[#allocation15] sm:$0x3] %vm1519, %v1532
    // Predicated region
    $region86: #{tpu_custom_call.1} parent=1 // pred_check
      _
    $region87: #{tpu_custom_call.1} parent=1 // pred_check_branch
      %1535 = sbr.rel (0) target = $region89
    $region88: #{tpu_custom_call.1} parent=1 // pred_region
      %1537 = vsyncadd [#allocation7], 0
      %s1539 = sshll.u32 [#allocation15], 4
      %s1540 = int_to_ptr.vmem [resolvable:$true] %s1539
      %s1541 = sshll.u32 %s16, 4
      %s1542 = int_to_ptr.hbm [resolvable:$true] %s1541
      %1544 = dma.vmem_to_hbm [thread:$0]  %s1540, 32, %s1542, [#allocation7]
    $region89: #{tpu_custom_call.1} parent=1 // pred_fallthru
      _
    // Predicated region
    $region90: #{tpu_custom_call.1} parent=1 // pred_check
      _
    $region91: #{tpu_custom_call.1} parent=1 // pred_check_branch
      %1546 = sbr.rel (0) target = $region93
    $region92: #{tpu_custom_call.1} parent=1 // pred_region
      %1548 = dma.done [#allocation7], 32
    $region93: #{tpu_custom_call.1} parent=1 // pred_fallthru
      _
    %1549 = vsyncpa [#allocation6], 1
    %1550 = vsyncpa [#allocation11], 1
    %1551 = vsyncpa [#allocation14], 1
    %1552 = vsyncpa [#allocation7], 1
    %1553 = vsyncpa [#allocation8], 1

</llo_original>
